<compile_context>
chip_gen: v5e
topology: v5e:2x2
jax: 0.10.0
libtpu: 0.0.40
codegen_flags: <defaults>
</compile_context>

<pallas_src>
import functools

import numpy as np
import jax
import jax.numpy as jnp
from jax.experimental import pallas as pl
from jax.experimental.pallas import tpu as pltpu


_SQRT1_2 = 0.7071067811865476
_LN_EPS = 1e-5
# Flip to True to push the erf divide onto the EUP (pl.reciprocal approx mode).
# Kept False by default so the fp32 demo check stays within 5e-4 of exact GELU.
_APPROX_RECIP_GELU = False


def _erf(x):
    # Abramowitz & Stegun 7.1.26 (max abs err ~1.5e-7): exp + VPU math only.
    a1, a2, a3, a4, a5 = 0.254829592, -0.284496736, 1.421413741, -1.453152027, 1.061405429
    p = 0.3275911
    sgn = jnp.where(x >= 0.0, 1.0, -1.0)
    ax = jnp.abs(x)
    den = 1.0 + p * ax
    if _APPROX_RECIP_GELU:
        t = pl.reciprocal(den, approx=True)      # EUP slot, frees VPU bundles
    else:
        t = 1.0 / den
    poly = ((((a5 * t + a4) * t + a3) * t + a2) * t + a1) * t
    return sgn * (1.0 - poly * jnp.exp(-ax * ax))


def _gelu(x):
    # torch.nn.GELU() default (exact, erf-based) semantics.
    return 0.5 * x * (1.0 + _erf(x * _SQRT1_2))


def _layernorm(x, gamma, beta, n_true):
    # Fused stats: one pass for sum and sum-of-squares.  Feature dim may be
    # zero-padded; n_true is the real feature count (padded columns are exact
    # zeros so the sums are unaffected, and padded gamma/beta are zero so the
    # padded outputs remain zero).
    inv_n = 1.0 / float(n_true)
    s = jnp.sum(x, axis=-1, keepdims=True)
    ss = jnp.sum(x * x, axis=-1, keepdims=True)
    mean = s * inv_n
    var = jnp.maximum(ss * inv_n - mean * mean, 0.0)
    return (x - mean) * jax.lax.rsqrt(var + _LN_EPS) * gamma + beta


def _mm_bias(a, w_ref, b_ref):
    # bf16 (or f32) operands, f32 MXU accumulation, f32 bias add.
    return (jnp.dot(a.astype(w_ref.dtype), w_ref[...],
                    preferred_element_type=jnp.float32)
            + b_ref[0].astype(jnp.float32))


def modality_projector_kernel(
    x_ref, pt_ref,
    w1_ref, b1_ref, g1_ref, be1_ref,
    w2_ref, b2_ref, g2_ref, be2_ref,
    w3_ref, b3_ref, g3_ref, be3_ref,
    w4_ref, b4_ref, g4_ref, be4_ref,
    w5_ref, b5_ref, g5_ref, be5_ref,
    o_ref,
    pooled_ref,
    *, ln_dims,
):
    s_idx = pl.program_id(1)
    n_s = pl.num_programs(1)

    Bb, Sc, Dinp = x_ref.shape
    _, T, Doutp = o_ref.shape
    Hp = w1_ref.shape[1]
    nH, nH2, nOut = ln_dims            # true (unpadded) feature sizes

    @pl.when(s_idx == 0)
    def _():
        pooled_ref[...] = jnp.zeros_like(pooled_ref)

    # --- feature extractor on this sequence chunk ---------------------------
    # Batch block merged into the matmul M dimension: (Bb*Sc, Dinp).
    # TODO(synk): Dropout(0.1) layers omitted (eval-mode identity).
    x = x_ref[...].reshape(Bb * Sc, Dinp)
    h = _gelu(_layernorm(_mm_bias(x, w1_ref, b1_ref), g1_ref[0], be1_ref[0], nH))
    h = _gelu(_layernorm(_mm_bias(h, w2_ref, b2_ref), g2_ref[0], be2_ref[0], nH))
    h = _gelu(_layernorm(_mm_bias(h, w3_ref, b3_ref), g3_ref[0], be3_ref[0], nH))

    # --- AdaptiveAvgPool1d partial sums (per batch element, f32) ------------
    # pt_ref is the (Sc, T) chunk of the (S, T) pooling operator; pooling is
    # linear so per-chunk accumulation is exact.
    h3 = h.reshape(Bb, Sc, Hp)
    pt = pt_ref[...].astype(jnp.float32)
    for b in range(Bb):                       # static, small batch block
        contrib = jax.lax.dot_general(
            pt, h3[b],
            dimension_numbers=(((0,), (0,)), ((), ())),   # pt^T @ h_b -> (T, Hp)
            preferred_element_type=jnp.float32)
        pooled_ref[b] = pooled_ref[b] + contrib

    # --- output projector + store (last chunk only) -------------------------
    @pl.when(s_idx == n_s - 1)
    def _():
        y = pooled_ref[...].reshape(Bb * T, Hp)
        y = _gelu(_layernorm(_mm_bias(y, w4_ref, b4_ref), g4_ref[0], be4_ref[0], nH2))
        y = _layernorm(_mm_bias(y, w5_ref, b5_ref), g5_ref[0], be5_ref[0], nOut)
        o_ref[...] = y.reshape(Bb, T, Doutp).astype(o_ref.dtype)


def _round_up(n, m=128):
    return ((n + m - 1) // m) * m


@functools.lru_cache(maxsize=None)
def adaptive_avg_pool_operator_t(seq_len, target_length):
    """Exact torch.nn.AdaptiveAvgPool1d operator, stored TRANSPOSED as (S, T):
    column t averages rows [floor(t*S/T), ceil((t+1)*S/T)).  Cached per (S, T)."""
    P = np.zeros((seq_len, target_length), dtype=np.float32)
    for t in range(target_length):
        start = (t * seq_len) // target_length
        end = -((-(t + 1) * seq_len) // target_length)   # ceil
        P[start:end, t] = 1.0 / (end - start)
    return jnp.asarray(P)


def modality_projector(x, params, *, target_length, block_b=None, block_s=None,
                       compute_dtype=jnp.float32, single_buffer_weights=False,
                       vmem_limit_bytes=None):
    B, S, Din = x.shape
    H = params["w1"].shape[1]
    H2 = params["w4"].shape[1]
    Dout = params["w5"].shape[1]
    T = target_length
    out_dtype = x.dtype

    # Batch block: keep >= 2 grid steps over batch (when B > 1) so the
    # "parallel" axis can shard across both v7x TensorCores.
    if block_b is None:
        if B == 1:
            block_b = 1
        else:
            cap = max(1, min(8, B // 2))
            block_b = max(d for d in range(1, cap + 1) if B % d == 0)
    assert B % block_b == 0, (B, block_b)

    # Sequence chunk: multiple of 8 (sublane) dividing S, ~512 rows per chunk
    # by default (use ~256 on v7x / larger on v6e via the block_s argument).
    if block_s is None:
        if S <= 512:
            block_s = S
        else:
            cands = [d for d in range(8, 513, 8) if S % d == 0]
            block_s = max(cands) if cands else S
    assert S % block_s == 0, (S, block_s)
    assert block_s == S or block_s % 8 == 0, block_s

    # Lane-dense padding of every feature dim (exactness preserved: padded
    # weight rows/cols, biases and LN gamma/beta are zero; LN divisors use the
    # true feature counts inside the kernel).
    Dinp, Hp, H2p, Doutp = (_round_up(d) for d in (Din, H, H2, Dout))

    def pad2(a, r, c):
        return jnp.pad(a, ((0, r - a.shape[0]), (0, c - a.shape[1])))

    cd = compute_dtype
    x_p = jnp.pad(x, ((0, 0), (0, 0), (0, Dinp - Din))).astype(cd)
    pt = adaptive_avg_pool_operator_t(S, T)                      # (S, T), f32

    wdims = [(Dinp, Hp), (Hp, Hp), (Hp, Hp), (Hp, H2p), (H2p, Doutp)]
    args = [x_p, pt]
    for i, (r, c) in enumerate(wdims, start=1):
        args += [pad2(params[f"w{i}"], r, c).astype(cd),        # matmul operand
                 pad2(params[f"b{i}"], 1, c),                    # f32 bias
                 pad2(params[f"g{i}"], 1, c),                    # f32 LN gamma (pad=0)
                 pad2(params[f"be{i}"], 1, c)]                   # f32 LN beta  (pad=0)

    def const_spec(shape):
        # Batch-invariant blocks.  For production v7x sizes, single-buffer them
        # (halves their VMEM residency on top of the bf16 halving).
        if single_buffer_weights:
            return pl.BlockSpec(shape, lambda i, s: (0,) * len(shape),
                                pipeline_mode=pl.Buffered(1))
        return pl.BlockSpec(shape, lambda i, s: (0,) * len(shape))

    in_specs = [
        pl.BlockSpec((block_b, block_s, Dinp), lambda i, s: (i, s, 0)),  # x chunk
        pl.BlockSpec((block_s, T), lambda i, s: (s, 0)),                 # pool chunk
    ]
    for (r, c) in wdims:
        in_specs += [const_spec((r, c)), const_spec((1, c)),
                     const_spec((1, c)), const_spec((1, c))]

    out_specs = pl.BlockSpec((block_b, T, Doutp), lambda i, s: (i, 0, 0))

    kernel = functools.partial(modality_projector_kernel, ln_dims=(H, H2, Dout))

    out = pl.pallas_call(
        kernel,
        out_shape=jax.ShapeDtypeStruct((B, T, Doutp), out_dtype),
        grid=(B // block_b, S // block_s),
        in_specs=in_specs,
        out_specs=out_specs,
        scratch_shapes=[pltpu.VMEM((block_b, T, Hp), jnp.float32)],
        compiler_params=pltpu.CompilerParams(
            dimension_semantics=("parallel", "arbitrary"),
            vmem_limit_bytes=vmem_limit_bytes),
    )(*args)

    return out[..., :Dout]


def init_params(key, input_dim, output_dim):
    """Xavier-uniform weights (stored pre-transposed so the kernel does x @ W).
    Biases / LN gammas are randomized so the numeric check exercises those
    code paths; forward semantics are unchanged."""
    H = 2 * input_dim
    dims = [(input_dim, H), (H, H), (H, H), (H, H // 2), (H // 2, output_dim)]
    params = {}
    keys = jax.random.split(key, 3 * len(dims))
    for i, (fi, fo) in enumerate(dims, start=1):
        kw, kb, kg = keys[3 * (i - 1):3 * i]
        bound = float(np.sqrt(6.0 / (fi + fo)))
        params[f"w{i}"] = jax.random.uniform(kw, (fi, fo), jnp.float32, -bound, bound)
        params[f"b{i}"] = 0.1 * jax.random.normal(kb, (1, fo), jnp.float32)
        params[f"g{i}"] = 1.0 + 0.1 * jax.random.normal(kg, (1, fo), jnp.float32)
        params[f"be{i}"] = jnp.zeros((1, fo), jnp.float32)
    return params


def reference(x, params, *, target_length):
    """Pure-JAX mirror of ModalityProjector.forward (eval mode), fp32."""
    hp = jax.lax.Precision.HIGHEST

    def ln(v, g, b):
        m = v.mean(-1, keepdims=True)
        va = ((v - m) ** 2).mean(-1, keepdims=True)
        return (v - m) * jax.lax.rsqrt(va + _LN_EPS) * g + b

    def gelu(v):  # exact erf GELU (torch.nn.GELU default)
        return 0.5 * v * (1.0 + jax.lax.erf(v * _SQRT1_2))

    h = x
    for i in (1, 2, 3):
        h = jnp.dot(h, params[f"w{i}"], precision=hp) + params[f"b{i}"]
        h = gelu(ln(h, params[f"g{i}"], params[f"be{i}"]))
    Pt = adaptive_avg_pool_operator_t(x.shape[1], target_length)   # (S, T)
    h = jnp.einsum("st,bsh->bth", Pt, h, precision=hp)
    h = jnp.dot(h, params["w4"], precision=hp) + params["b4"]
    h = gelu(ln(h, params["g4"], params["be4"]))
    h = jnp.dot(h, params["w5"], precision=hp) + params["b5"]
    h = ln(h, params["g5"], params["be5"])
    return h


if __name__ == "__main__":
    audio_hidden_dim = 32       # -> hidden_dim = 64
    lm_hidden_dim = 48
    target_length = 8
    B, S = 2, 16

    key = jax.random.PRNGKey(0)
    kx, kp = jax.random.split(key)
    x = jax.random.normal(kx, (B, S, audio_hidden_dim), jnp.float32)
    params = init_params(kp, audio_hidden_dim, lm_hidden_dim)

    y_ref = reference(x, params, target_length=target_length)

    # fp32 path (tight check); block_s=8 exercises the chunked pooled-accumulator path.
    y32 = modality_projector(x, params, target_length=target_length,
                             block_s=8, compute_dtype=jnp.float32)
    y32 = jax.block_until_ready(y32)
    assert y32.shape == (B, target_length, lm_hidden_dim)
    err32 = float(jnp.max(jnp.abs(y32 - y_ref)))
    assert jnp.allclose(y32, y_ref, atol=5e-4, rtol=5e-4), \
        f"fp32 mismatch vs reference (max abs err {err32})"

    # bf16 MXU path (bf16 operands, f32 accumulation / LN / GELU / pooling).
    y16 = modality_projector(x, params, target_length=target_length,
                             block_s=8, compute_dtype=jnp.bfloat16)
    y16 = jax.block_until_ready(y16)
    err16 = float(jnp.max(jnp.abs(y16 - y_ref)))
    assert jnp.allclose(y16, y_ref, atol=3e-2, rtol=3e-2), \
        f"bf16 mismatch vs reference (max abs err {err16})"

    print("KERNEL_OK")
</pallas_src>

<mosaic_0001>
module attributes {stable_mosaic.version = 11 : i64} {
  func.func @modality_projector_kernel(%arg0: i32, %arg1: i32, %arg2: memref<1x8x128xf32, #tpu.memory_space<vmem>>, %arg3: memref<8x8xf32, #tpu.memory_space<vmem>>, %arg4: memref<128x128xf32, #tpu.memory_space<vmem>>, %arg5: memref<1x128xf32, #tpu.memory_space<vmem>>, %arg6: memref<1x128xf32, #tpu.memory_space<vmem>>, %arg7: memref<1x128xf32, #tpu.memory_space<vmem>>, %arg8: memref<128x128xf32, #tpu.memory_space<vmem>>, %arg9: memref<1x128xf32, #tpu.memory_space<vmem>>, %arg10: memref<1x128xf32, #tpu.memory_space<vmem>>, %arg11: memref<1x128xf32, #tpu.memory_space<vmem>>, %arg12: memref<128x128xf32, #tpu.memory_space<vmem>>, %arg13: memref<1x128xf32, #tpu.memory_space<vmem>>, %arg14: memref<1x128xf32, #tpu.memory_space<vmem>>, %arg15: memref<1x128xf32, #tpu.memory_space<vmem>>, %arg16: memref<128x128xf32, #tpu.memory_space<vmem>>, %arg17: memref<1x128xf32, #tpu.memory_space<vmem>>, %arg18: memref<1x128xf32, #tpu.memory_space<vmem>>, %arg19: memref<1x128xf32, #tpu.memory_space<vmem>>, %arg20: memref<128x128xf32, #tpu.memory_space<vmem>>, %arg21: memref<1x128xf32, #tpu.memory_space<vmem>>, %arg22: memref<1x128xf32, #tpu.memory_space<vmem>>, %arg23: memref<1x128xf32, #tpu.memory_space<vmem>>, %arg24: memref<1x8x128xf32, #tpu.memory_space<vmem>>, %arg25: memref<1x8x128xf32, #tpu.memory_space<vmem>>) attributes {dimension_semantics = [#tpu.dimension_semantics<parallel>, #tpu.dimension_semantics<arbitrary>], iteration_bounds = array<i64: 2, 2>, scalar_prefetch = 0 : i64, scratch_operands = 1 : i64, tpu.core_type = #tpu.core_type<tc>, window_params = [{transform_indices = @transform_0, window_bounds = array<i64: 1, 8, 128>}, {transform_indices = @transform_1, window_bounds = array<i64: 8, 8>}, {pipeline_mode = #tpu.pipeline_mode<synchronous>, transform_indices = @transform_2, window_bounds = array<i64: 128, 128>}, {pipeline_mode = #tpu.pipeline_mode<synchronous>, transform_indices = @transform_3, window_bounds = array<i64: 1, 128>}, {pipeline_mode = #tpu.pipeline_mode<synchronous>, transform_indices = @transform_4, window_bounds = array<i64: 1, 128>}, {pipeline_mode = #tpu.pipeline_mode<synchronous>, transform_indices = @transform_5, window_bounds = array<i64: 1, 128>}, {pipeline_mode = #tpu.pipeline_mode<synchronous>, transform_indices = @transform_6, window_bounds = array<i64: 128, 128>}, {pipeline_mode = #tpu.pipeline_mode<synchronous>, transform_indices = @transform_7, window_bounds = array<i64: 1, 128>}, {pipeline_mode = #tpu.pipeline_mode<synchronous>, transform_indices = @transform_8, window_bounds = array<i64: 1, 128>}, {pipeline_mode = #tpu.pipeline_mode<synchronous>, transform_indices = @transform_9, window_bounds = array<i64: 1, 128>}, {pipeline_mode = #tpu.pipeline_mode<synchronous>, transform_indices = @transform_10, window_bounds = array<i64: 128, 128>}, {pipeline_mode = #tpu.pipeline_mode<synchronous>, transform_indices = @transform_11, window_bounds = array<i64: 1, 128>}, {pipeline_mode = #tpu.pipeline_mode<synchronous>, transform_indices = @transform_12, window_bounds = array<i64: 1, 128>}, {pipeline_mode = #tpu.pipeline_mode<synchronous>, transform_indices = @transform_13, window_bounds = array<i64: 1, 128>}, {pipeline_mode = #tpu.pipeline_mode<synchronous>, transform_indices = @transform_14, window_bounds = array<i64: 128, 128>}, {pipeline_mode = #tpu.pipeline_mode<synchronous>, transform_indices = @transform_15, window_bounds = array<i64: 1, 128>}, {pipeline_mode = #tpu.pipeline_mode<synchronous>, transform_indices = @transform_16, window_bounds = array<i64: 1, 128>}, {pipeline_mode = #tpu.pipeline_mode<synchronous>, transform_indices = @transform_17, window_bounds = array<i64: 1, 128>}, {pipeline_mode = #tpu.pipeline_mode<synchronous>, transform_indices = @transform_18, window_bounds = array<i64: 128, 128>}, {pipeline_mode = #tpu.pipeline_mode<synchronous>, transform_indices = @transform_19, window_bounds = array<i64: 1, 128>}, {pipeline_mode = #tpu.pipeline_mode<synchronous>, transform_indices = @transform_20, window_bounds = array<i64: 1, 128>}, {pipeline_mode = #tpu.pipeline_mode<synchronous>, transform_indices = @transform_21, window_bounds = array<i64: 1, 128>}, {transform_indices = @transform_22, window_bounds = array<i64: 1, 8, 128>}]} {
    %c0_i32 = arith.constant 0 : i32
    %0 = arith.cmpi eq, %arg1, %c0_i32 : i32
    %1 = arith.extui %0 : i1 to i32
    %c0_i32_0 = arith.constant 0 : i32
    %2 = arith.cmpi ne, %1, %c0_i32_0 : i32
    scf.if %2 {
      %cst_105 = arith.constant 0.000000e+00 : f32
      %252 = vector.broadcast %cst_105 : f32 to vector<1x8x128xf32>
      %c0_106 = arith.constant 0 : index
      %c0_107 = arith.constant 0 : index
      %c0_108 = arith.constant 0 : index
      %253 = vector.load %arg25[%c0_106, %c0_107, %c0_108] : memref<1x8x128xf32, #tpu.memory_space<vmem>>, vector<1x8x128xf32>
      tpu.vector_store %arg25[%c0_106, %c0_107, %c0_108], %252 {strides = array<i32>} : memref<1x8x128xf32, #tpu.memory_space<vmem>>, vector<1x8x128xf32>,
    } else {
    }
    %c0 = arith.constant 0 : index
    %c0_1 = arith.constant 0 : index
    %c0_2 = arith.constant 0 : index
    %3 = vector.load %arg2[%c0, %c0_1, %c0_2] : memref<1x8x128xf32, #tpu.memory_space<vmem>>, vector<1x8x128xf32>
    %4 = vector.shape_cast %3 : vector<1x8x128xf32> to vector<8x128xf32>
    %c0_3 = arith.constant 0 : index
    %c0_4 = arith.constant 0 : index
    %5 = vector.load %arg4[%c0_3, %c0_4] : memref<128x128xf32, #tpu.memory_space<vmem>>, vector<128x128xf32>
    %cst = arith.constant dense<0.000000e+00> : vector<8x128xf32>
    %6 = tpu.matmul %4, %5, %cst {dimension_numbers = #tpu.dot_dimension_numbers<[1], [0], [0], [1], [0, 0, 1, 1], [], []>} : vector<8x128xf32>, vector<128x128xf32>, vector<8x128xf32> -> vector<8x128xf32>
    %c0_5 = arith.constant 0 : index
    %c0_6 = arith.constant 0 : index
    %7 = vector.load %arg5[%c0_5, %c0_6] : memref<1x128xf32, #tpu.memory_space<vmem>>, vector<1x128xf32>
    %8 = vector.shape_cast %7 : vector<1x128xf32> to vector<128xf32>
    %9 = vector.shape_cast %8 : vector<128xf32> to vector<1x128xf32>
    %10 = vector.broadcast %9 : vector<1x128xf32> to vector<8x128xf32>
    %11 = arith.addf %6, %10 : vector<8x128xf32>
    %c0_7 = arith.constant 0 : index
    %c0_8 = arith.constant 0 : index
    %12 = vector.load %arg6[%c0_7, %c0_8] : memref<1x128xf32, #tpu.memory_space<vmem>>, vector<1x128xf32>
    %13 = vector.shape_cast %12 : vector<1x128xf32> to vector<128xf32>
    %c0_9 = arith.constant 0 : index
    %c0_10 = arith.constant 0 : index
    %14 = vector.load %arg7[%c0_9, %c0_10] : memref<1x128xf32, #tpu.memory_space<vmem>>, vector<1x128xf32>
    %15 = vector.shape_cast %14 : vector<1x128xf32> to vector<128xf32>
    %cst_11 = arith.constant dense<0.000000e+00> : vector<8xf32>
    %16 = vector.multi_reduction <add>, %11, %cst_11 [1] : vector<8x128xf32> to vector<8xf32>
    %17 = vector.shape_cast %16 : vector<8xf32> to vector<8x1xf32>
    %18 = arith.mulf %11, %11 : vector<8x128xf32>
    %cst_12 = arith.constant dense<0.000000e+00> : vector<8xf32>
    %19 = vector.multi_reduction <add>, %18, %cst_12 [1] : vector<8x128xf32> to vector<8xf32>
    %20 = vector.shape_cast %19 : vector<8xf32> to vector<8x1xf32>
    %cst_13 = arith.constant 1.562500e-02 : f32
    %21 = vector.broadcast %cst_13 : f32 to vector<8x1xf32>
    %22 = arith.mulf %17, %21 : vector<8x1xf32>
    %cst_14 = arith.constant 1.562500e-02 : f32
    %23 = vector.broadcast %cst_14 : f32 to vector<8x1xf32>
    %24 = arith.mulf %20, %23 : vector<8x1xf32>
    %25 = arith.mulf %22, %22 : vector<8x1xf32>
    %26 = arith.subf %24, %25 : vector<8x1xf32>
    %cst_15 = arith.constant 0.000000e+00 : f32
    %27 = vector.broadcast %cst_15 : f32 to vector<8x1xf32>
    %28 = arith.maximumf %26, %27 : vector<8x1xf32>
    %29 = vector.broadcast %22 : vector<8x1xf32> to vector<8x128xf32>
    %30 = arith.subf %11, %29 : vector<8x128xf32>
    %cst_16 = arith.constant 9.99999974E-6 : f32
    %31 = vector.broadcast %cst_16 : f32 to vector<8x1xf32>
    %32 = arith.addf %28, %31 : vector<8x1xf32>
    %33 = math.rsqrt %32 : vector<8x1xf32>
    %34 = vector.broadcast %33 : vector<8x1xf32> to vector<8x128xf32>
    %35 = arith.mulf %30, %34 : vector<8x128xf32>
    %36 = vector.shape_cast %13 : vector<128xf32> to vector<1x128xf32>
    %37 = vector.broadcast %36 : vector<1x128xf32> to vector<8x128xf32>
    %38 = arith.mulf %35, %37 : vector<8x128xf32>
    %39 = vector.shape_cast %15 : vector<128xf32> to vector<1x128xf32>
    %40 = vector.broadcast %39 : vector<1x128xf32> to vector<8x128xf32>
    %41 = arith.addf %38, %40 : vector<8x128xf32>
    %cst_17 = arith.constant 5.000000e-01 : f32
    %42 = vector.broadcast %cst_17 : f32 to vector<8x128xf32>
    %43 = arith.mulf %42, %41 : vector<8x128xf32>
    %cst_18 = arith.constant 0.707106769 : f32
    %44 = vector.broadcast %cst_18 : f32 to vector<8x128xf32>
    %45 = arith.mulf %41, %44 : vector<8x128xf32>
    %cst_19 = arith.constant 0.000000e+00 : f32
    %46 = vector.broadcast %cst_19 : f32 to vector<8x128xf32>
    %47 = arith.cmpf oge, %45, %46 : vector<8x128xf32>
    %cst_20 = arith.constant 1.000000e+00 : f32
    %cst_21 = arith.constant -1.000000e+00 : f32
    %48 = vector.broadcast %cst_20 : f32 to vector<8x128xf32>
    %49 = vector.broadcast %cst_21 : f32 to vector<8x128xf32>
    %50 = arith.select %47, %48, %49 : vector<8x128xi1>, vector<8x128xf32>
    %51 = math.absf %45 : vector<8x128xf32>
    %cst_22 = arith.constant 0.327591091 : f32
    %52 = vector.broadcast %cst_22 : f32 to vector<8x128xf32>
    %53 = arith.mulf %52, %51 : vector<8x128xf32>
    %cst_23 = arith.constant 1.000000e+00 : f32
    %54 = vector.broadcast %cst_23 : f32 to vector<8x128xf32>
    %55 = arith.addf %54, %53 : vector<8x128xf32>
    %cst_24 = arith.constant 1.000000e+00 : f32
    %56 = vector.broadcast %cst_24 : f32 to vector<8x128xf32>
    %57 = arith.divf %56, %55 : vector<8x128xf32>
    %cst_25 = arith.constant 1.06140542 : f32
    %58 = vector.broadcast %cst_25 : f32 to vector<8x128xf32>
    %59 = arith.mulf %58, %57 : vector<8x128xf32>
    %cst_26 = arith.constant -1.45315206 : f32
    %60 = vector.broadcast %cst_26 : f32 to vector<8x128xf32>
    %61 = arith.addf %59, %60 : vector<8x128xf32>
    %62 = arith.mulf %61, %57 : vector<8x128xf32>
    %cst_27 = arith.constant 1.42141378 : f32
    %63 = vector.broadcast %cst_27 : f32 to vector<8x128xf32>
    %64 = arith.addf %62, %63 : vector<8x128xf32>
    %65 = arith.mulf %64, %57 : vector<8x128xf32>
    %cst_28 = arith.constant -0.284496725 : f32
    %66 = vector.broadcast %cst_28 : f32 to vector<8x128xf32>
    %67 = arith.addf %65, %66 : vector<8x128xf32>
    %68 = arith.mulf %67, %57 : vector<8x128xf32>
    %cst_29 = arith.constant 0.254829586 : f32
    %69 = vector.broadcast %cst_29 : f32 to vector<8x128xf32>
    %70 = arith.addf %68, %69 : vector<8x128xf32>
    %71 = arith.mulf %70, %57 : vector<8x128xf32>
    %cst_30 = arith.constant 0.000000e+00 : f32
    %72 = vector.broadcast %cst_30 : f32 to vector<8x128xf32>
    %73 = arith.subf %72, %51 : vector<8x128xf32>
    %74 = arith.mulf %73, %51 : vector<8x128xf32>
    %75 = math.exp %74 : vector<8x128xf32>
    %76 = arith.mulf %71, %75 : vector<8x128xf32>
    %cst_31 = arith.constant 1.000000e+00 : f32
    %77 = vector.broadcast %cst_31 : f32 to vector<8x128xf32>
    %78 = arith.subf %77, %76 : vector<8x128xf32>
    %79 = arith.mulf %50, %78 : vector<8x128xf32>
    %cst_32 = arith.constant 1.000000e+00 : f32
    %80 = vector.broadcast %cst_32 : f32 to vector<8x128xf32>
    %81 = arith.addf %80, %79 : vector<8x128xf32>
    %82 = arith.mulf %43, %81 : vector<8x128xf32>
    %c0_33 = arith.constant 0 : index
    %c0_34 = arith.constant 0 : index
    %83 = vector.load %arg8[%c0_33, %c0_34] : memref<128x128xf32, #tpu.memory_space<vmem>>, vector<128x128xf32>
    %cst_35 = arith.constant dense<0.000000e+00> : vector<8x128xf32>
    %84 = tpu.matmul %82, %83, %cst_35 {dimension_numbers = #tpu.dot_dimension_numbers<[1], [0], [0], [1], [0, 0, 1, 1], [], []>} : vector<8x128xf32>, vector<128x128xf32>, vector<8x128xf32> -> vector<8x128xf32>
    %c0_36 = arith.constant 0 : index
    %c0_37 = arith.constant 0 : index
    %85 = vector.load %arg9[%c0_36, %c0_37] : memref<1x128xf32, #tpu.memory_space<vmem>>, vector<1x128xf32>
    %86 = vector.shape_cast %85 : vector<1x128xf32> to vector<128xf32>
    %87 = vector.shape_cast %86 : vector<128xf32> to vector<1x128xf32>
    %88 = vector.broadcast %87 : vector<1x128xf32> to vector<8x128xf32>
    %89 = arith.addf %84, %88 : vector<8x128xf32>
    %c0_38 = arith.constant 0 : index
    %c0_39 = arith.constant 0 : index
    %90 = vector.load %arg10[%c0_38, %c0_39] : memref<1x128xf32, #tpu.memory_space<vmem>>, vector<1x128xf32>
    %91 = vector.shape_cast %90 : vector<1x128xf32> to vector<128xf32>
    %c0_40 = arith.constant 0 : index
    %c0_41 = arith.constant 0 : index
    %92 = vector.load %arg11[%c0_40, %c0_41] : memref<1x128xf32, #tpu.memory_space<vmem>>, vector<1x128xf32>
    %93 = vector.shape_cast %92 : vector<1x128xf32> to vector<128xf32>
    %cst_42 = arith.constant dense<0.000000e+00> : vector<8xf32>
    %94 = vector.multi_reduction <add>, %89, %cst_42 [1] : vector<8x128xf32> to vector<8xf32>
    %95 = vector.shape_cast %94 : vector<8xf32> to vector<8x1xf32>
    %96 = arith.mulf %89, %89 : vector<8x128xf32>
    %cst_43 = arith.constant dense<0.000000e+00> : vector<8xf32>
    %97 = vector.multi_reduction <add>, %96, %cst_43 [1] : vector<8x128xf32> to vector<8xf32>
    %98 = vector.shape_cast %97 : vector<8xf32> to vector<8x1xf32>
    %cst_44 = arith.constant 1.562500e-02 : f32
    %99 = vector.broadcast %cst_44 : f32 to vector<8x1xf32>
    %100 = arith.mulf %95, %99 : vector<8x1xf32>
    %cst_45 = arith.constant 1.562500e-02 : f32
    %101 = vector.broadcast %cst_45 : f32 to vector<8x1xf32>
    %102 = arith.mulf %98, %101 : vector<8x1xf32>
    %103 = arith.mulf %100, %100 : vector<8x1xf32>
    %104 = arith.subf %102, %103 : vector<8x1xf32>
    %cst_46 = arith.constant 0.000000e+00 : f32
    %105 = vector.broadcast %cst_46 : f32 to vector<8x1xf32>
    %106 = arith.maximumf %104, %105 : vector<8x1xf32>
    %107 = vector.broadcast %100 : vector<8x1xf32> to vector<8x128xf32>
    %108 = arith.subf %89, %107 : vector<8x128xf32>
    %cst_47 = arith.constant 9.99999974E-6 : f32
    %109 = vector.broadcast %cst_47 : f32 to vector<8x1xf32>
    %110 = arith.addf %106, %109 : vector<8x1xf32>
    %111 = math.rsqrt %110 : vector<8x1xf32>
    %112 = vector.broadcast %111 : vector<8x1xf32> to vector<8x128xf32>
    %113 = arith.mulf %108, %112 : vector<8x128xf32>
    %114 = vector.shape_cast %91 : vector<128xf32> to vector<1x128xf32>
    %115 = vector.broadcast %114 : vector<1x128xf32> to vector<8x128xf32>
    %116 = arith.mulf %113, %115 : vector<8x128xf32>
    %117 = vector.shape_cast %93 : vector<128xf32> to vector<1x128xf32>
    %118 = vector.broadcast %117 : vector<1x128xf32> to vector<8x128xf32>
    %119 = arith.addf %116, %118 : vector<8x128xf32>
    %cst_48 = arith.constant 5.000000e-01 : f32
    %120 = vector.broadcast %cst_48 : f32 to vector<8x128xf32>
    %121 = arith.mulf %120, %119 : vector<8x128xf32>
    %cst_49 = arith.constant 0.707106769 : f32
    %122 = vector.broadcast %cst_49 : f32 to vector<8x128xf32>
    %123 = arith.mulf %119, %122 : vector<8x128xf32>
    %cst_50 = arith.constant 0.000000e+00 : f32
    %124 = vector.broadcast %cst_50 : f32 to vector<8x128xf32>
    %125 = arith.cmpf oge, %123, %124 : vector<8x128xf32>
    %cst_51 = arith.constant 1.000000e+00 : f32
    %cst_52 = arith.constant -1.000000e+00 : f32
    %126 = vector.broadcast %cst_51 : f32 to vector<8x128xf32>
    %127 = vector.broadcast %cst_52 : f32 to vector<8x128xf32>
    %128 = arith.select %125, %126, %127 : vector<8x128xi1>, vector<8x128xf32>
    %129 = math.absf %123 : vector<8x128xf32>
    %cst_53 = arith.constant 0.327591091 : f32
    %130 = vector.broadcast %cst_53 : f32 to vector<8x128xf32>
    %131 = arith.mulf %130, %129 : vector<8x128xf32>
    %cst_54 = arith.constant 1.000000e+00 : f32
    %132 = vector.broadcast %cst_54 : f32 to vector<8x128xf32>
    %133 = arith.addf %132, %131 : vector<8x128xf32>
    %cst_55 = arith.constant 1.000000e+00 : f32
    %134 = vector.broadcast %cst_55 : f32 to vector<8x128xf32>
    %135 = arith.divf %134, %133 : vector<8x128xf32>
    %cst_56 = arith.constant 1.06140542 : f32
    %136 = vector.broadcast %cst_56 : f32 to vector<8x128xf32>
    %137 = arith.mulf %136, %135 : vector<8x128xf32>
    %cst_57 = arith.constant -1.45315206 : f32
    %138 = vector.broadcast %cst_57 : f32 to vector<8x128xf32>
    %139 = arith.addf %137, %138 : vector<8x128xf32>
    %140 = arith.mulf %139, %135 : vector<8x128xf32>
    %cst_58 = arith.constant 1.42141378 : f32
    %141 = vector.broadcast %cst_58 : f32 to vector<8x128xf32>
    %142 = arith.addf %140, %141 : vector<8x128xf32>
    %143 = arith.mulf %142, %135 : vector<8x128xf32>
    %cst_59 = arith.constant -0.284496725 : f32
    %144 = vector.broadcast %cst_59 : f32 to vector<8x128xf32>
    %145 = arith.addf %143, %144 : vector<8x128xf32>
    %146 = arith.mulf %145, %135 : vector<8x128xf32>
    %cst_60 = arith.constant 0.254829586 : f32
    %147 = vector.broadcast %cst_60 : f32 to vector<8x128xf32>
    %148 = arith.addf %146, %147 : vector<8x128xf32>
    %149 = arith.mulf %148, %135 : vector<8x128xf32>
    %cst_61 = arith.constant 0.000000e+00 : f32
    %150 = vector.broadcast %cst_61 : f32 to vector<8x128xf32>
    %151 = arith.subf %150, %129 : vector<8x128xf32>
    %152 = arith.mulf %151, %129 : vector<8x128xf32>
    %153 = math.exp %152 : vector<8x128xf32>
    %154 = arith.mulf %149, %153 : vector<8x128xf32>
    %cst_62 = arith.constant 1.000000e+00 : f32
    %155 = vector.broadcast %cst_62 : f32 to vector<8x128xf32>
    %156 = arith.subf %155, %154 : vector<8x128xf32>
    %157 = arith.mulf %128, %156 : vector<8x128xf32>
    %cst_63 = arith.constant 1.000000e+00 : f32
    %158 = vector.broadcast %cst_63 : f32 to vector<8x128xf32>
    %159 = arith.addf %158, %157 : vector<8x128xf32>
    %160 = arith.mulf %121, %159 : vector<8x128xf32>
    %c0_64 = arith.constant 0 : index
    %c0_65 = arith.constant 0 : index
    %161 = vector.load %arg12[%c0_64, %c0_65] : memref<128x128xf32, #tpu.memory_space<vmem>>, vector<128x128xf32>
    %cst_66 = arith.constant dense<0.000000e+00> : vector<8x128xf32>
    %162 = tpu.matmul %160, %161, %cst_66 {dimension_numbers = #tpu.dot_dimension_numbers<[1], [0], [0], [1], [0, 0, 1, 1], [], []>} : vector<8x128xf32>, vector<128x128xf32>, vector<8x128xf32> -> vector<8x128xf32>
    %c0_67 = arith.constant 0 : index
    %c0_68 = arith.constant 0 : index
    %163 = vector.load %arg13[%c0_67, %c0_68] : memref<1x128xf32, #tpu.memory_space<vmem>>, vector<1x128xf32>
    %164 = vector.shape_cast %163 : vector<1x128xf32> to vector<128xf32>
    %165 = vector.shape_cast %164 : vector<128xf32> to vector<1x128xf32>
    %166 = vector.broadcast %165 : vector<1x128xf32> to vector<8x128xf32>
    %167 = arith.addf %162, %166 : vector<8x128xf32>
    %c0_69 = arith.constant 0 : index
    %c0_70 = arith.constant 0 : index
    %168 = vector.load %arg14[%c0_69, %c0_70] : memref<1x128xf32, #tpu.memory_space<vmem>>, vector<1x128xf32>
    %169 = vector.shape_cast %168 : vector<1x128xf32> to vector<128xf32>
    %c0_71 = arith.constant 0 : index
    %c0_72 = arith.constant 0 : index
    %170 = vector.load %arg15[%c0_71, %c0_72] : memref<1x128xf32, #tpu.memory_space<vmem>>, vector<1x128xf32>
    %171 = vector.shape_cast %170 : vector<1x128xf32> to vector<128xf32>
    %cst_73 = arith.constant dense<0.000000e+00> : vector<8xf32>
    %172 = vector.multi_reduction <add>, %167, %cst_73 [1] : vector<8x128xf32> to vector<8xf32>
    %173 = vector.shape_cast %172 : vector<8xf32> to vector<8x1xf32>
    %174 = arith.mulf %167, %167 : vector<8x128xf32>
    %cst_74 = arith.constant dense<0.000000e+00> : vector<8xf32>
    %175 = vector.multi_reduction <add>, %174, %cst_74 [1] : vector<8x128xf32> to vector<8xf32>
    %176 = vector.shape_cast %175 : vector<8xf32> to vector<8x1xf32>
    %cst_75 = arith.constant 1.562500e-02 : f32
    %177 = vector.broadcast %cst_75 : f32 to vector<8x1xf32>
    %178 = arith.mulf %173, %177 : vector<8x1xf32>
    %cst_76 = arith.constant 1.562500e-02 : f32
    %179 = vector.broadcast %cst_76 : f32 to vector<8x1xf32>
    %180 = arith.mulf %176, %179 : vector<8x1xf32>
    %181 = arith.mulf %178, %178 : vector<8x1xf32>
    %182 = arith.subf %180, %181 : vector<8x1xf32>
    %cst_77 = arith.constant 0.000000e+00 : f32
    %183 = vector.broadcast %cst_77 : f32 to vector<8x1xf32>
    %184 = arith.maximumf %182, %183 : vector<8x1xf32>
    %185 = vector.broadcast %178 : vector<8x1xf32> to vector<8x128xf32>
    %186 = arith.subf %167, %185 : vector<8x128xf32>
    %cst_78 = arith.constant 9.99999974E-6 : f32
    %187 = vector.broadcast %cst_78 : f32 to vector<8x1xf32>
    %188 = arith.addf %184, %187 : vector<8x1xf32>
    %189 = math.rsqrt %188 : vector<8x1xf32>
    %190 = vector.broadcast %189 : vector<8x1xf32> to vector<8x128xf32>
    %191 = arith.mulf %186, %190 : vector<8x128xf32>
    %192 = vector.shape_cast %169 : vector<128xf32> to vector<1x128xf32>
    %193 = vector.broadcast %192 : vector<1x128xf32> to vector<8x128xf32>
    %194 = arith.mulf %191, %193 : vector<8x128xf32>
    %195 = vector.shape_cast %171 : vector<128xf32> to vector<1x128xf32>
    %196 = vector.broadcast %195 : vector<1x128xf32> to vector<8x128xf32>
    %197 = arith.addf %194, %196 : vector<8x128xf32>
    %cst_79 = arith.constant 5.000000e-01 : f32
    %198 = vector.broadcast %cst_79 : f32 to vector<8x128xf32>
    %199 = arith.mulf %198, %197 : vector<8x128xf32>
    %cst_80 = arith.constant 0.707106769 : f32
    %200 = vector.broadcast %cst_80 : f32 to vector<8x128xf32>
    %201 = arith.mulf %197, %200 : vector<8x128xf32>
    %cst_81 = arith.constant 0.000000e+00 : f32
    %202 = vector.broadcast %cst_81 : f32 to vector<8x128xf32>
    %203 = arith.cmpf oge, %201, %202 : vector<8x128xf32>
    %cst_82 = arith.constant 1.000000e+00 : f32
    %cst_83 = arith.constant -1.000000e+00 : f32
    %204 = vector.broadcast %cst_82 : f32 to vector<8x128xf32>
    %205 = vector.broadcast %cst_83 : f32 to vector<8x128xf32>
    %206 = arith.select %203, %204, %205 : vector<8x128xi1>, vector<8x128xf32>
    %207 = math.absf %201 : vector<8x128xf32>
    %cst_84 = arith.constant 0.327591091 : f32
    %208 = vector.broadcast %cst_84 : f32 to vector<8x128xf32>
    %209 = arith.mulf %208, %207 : vector<8x128xf32>
    %cst_85 = arith.constant 1.000000e+00 : f32
    %210 = vector.broadcast %cst_85 : f32 to vector<8x128xf32>
    %211 = arith.addf %210, %209 : vector<8x128xf32>
    %cst_86 = arith.constant 1.000000e+00 : f32
    %212 = vector.broadcast %cst_86 : f32 to vector<8x128xf32>
    %213 = arith.divf %212, %211 : vector<8x128xf32>
    %cst_87 = arith.constant 1.06140542 : f32
    %214 = vector.broadcast %cst_87 : f32 to vector<8x128xf32>
    %215 = arith.mulf %214, %213 : vector<8x128xf32>
    %cst_88 = arith.constant -1.45315206 : f32
    %216 = vector.broadcast %cst_88 : f32 to vector<8x128xf32>
    %217 = arith.addf %215, %216 : vector<8x128xf32>
    %218 = arith.mulf %217, %213 : vector<8x128xf32>
    %cst_89 = arith.constant 1.42141378 : f32
    %219 = vector.broadcast %cst_89 : f32 to vector<8x128xf32>
    %220 = arith.addf %218, %219 : vector<8x128xf32>
    %221 = arith.mulf %220, %213 : vector<8x128xf32>
    %cst_90 = arith.constant -0.284496725 : f32
    %222 = vector.broadcast %cst_90 : f32 to vector<8x128xf32>
    %223 = arith.addf %221, %222 : vector<8x128xf32>
    %224 = arith.mulf %223, %213 : vector<8x128xf32>
    %cst_91 = arith.constant 0.254829586 : f32
    %225 = vector.broadcast %cst_91 : f32 to vector<8x128xf32>
    %226 = arith.addf %224, %225 : vector<8x128xf32>
    %227 = arith.mulf %226, %213 : vector<8x128xf32>
    %cst_92 = arith.constant 0.000000e+00 : f32
    %228 = vector.broadcast %cst_92 : f32 to vector<8x128xf32>
    %229 = arith.subf %228, %207 : vector<8x128xf32>
    %230 = arith.mulf %229, %207 : vector<8x128xf32>
    %231 = math.exp %230 : vector<8x128xf32>
    %232 = arith.mulf %227, %231 : vector<8x128xf32>
    %cst_93 = arith.constant 1.000000e+00 : f32
    %233 = vector.broadcast %cst_93 : f32 to vector<8x128xf32>
    %234 = arith.subf %233, %232 : vector<8x128xf32>
    %235 = arith.mulf %206, %234 : vector<8x128xf32>
    %cst_94 = arith.constant 1.000000e+00 : f32
    %236 = vector.broadcast %cst_94 : f32 to vector<8x128xf32>
    %237 = arith.addf %236, %235 : vector<8x128xf32>
    %238 = arith.mulf %199, %237 : vector<8x128xf32>
    %239 = vector.shape_cast %238 : vector<8x128xf32> to vector<1x8x128xf32>
    %c0_95 = arith.constant 0 : index
    %c0_96 = arith.constant 0 : index
    %240 = vector.load %arg3[%c0_95, %c0_96] : memref<8x8xf32, #tpu.memory_space<vmem>>, vector<8x8xf32>
    %241 = vector.shape_cast %239 : vector<1x8x128xf32> to vector<8x128xf32>
    %cst_97 = arith.constant dense<0.000000e+00> : vector<8x128xf32>
    %242 = tpu.matmul %240, %241, %cst_97 {dimension_numbers = #tpu.dot_dimension_numbers<[0], [0], [1], [1], [0, 1, 1, 1], [], []>} : vector<8x8xf32>, vector<8x128xf32>, vector<8x128xf32> -> vector<8x128xf32>
    %c0_98 = arith.constant 0 : index
    %c0_99 = arith.constant 0 : index
    %c0_100 = arith.constant 0 : index
    %243 = vector.load %arg25[%c0_98, %c0_99, %c0_100] : memref<1x8x128xf32, #tpu.memory_space<vmem>>, vector<1x8x128xf32>
    %244 = vector.shape_cast %243 : vector<1x8x128xf32> to vector<8x128xf32>
    %245 = arith.addf %244, %242 : vector<8x128xf32>
    %c0_101 = arith.constant 0 : index
    %c0_102 = arith.constant 0 : index
    %c0_103 = arith.constant 0 : index
    %246 = vector.load %arg25[%c0_101, %c0_102, %c0_103] : memref<1x8x128xf32, #tpu.memory_space<vmem>>, vector<1x8x128xf32>
    %247 = vector.shape_cast %246 : vector<1x8x128xf32> to vector<8x128xf32>
    %248 = vector.shape_cast %245 : vector<8x128xf32> to vector<1x8x128xf32>
    tpu.vector_store %arg25[%c0_101, %c0_102, %c0_103], %248 {strides = array<i32>} : memref<1x8x128xf32, #tpu.memory_space<vmem>>, vector<1x8x128xf32>,
    %c1_i32 = arith.constant 1 : i32
    %249 = arith.cmpi eq, %arg1, %c1_i32 : i32
    %250 = arith.extui %249 : i1 to i32
    %c0_i32_104 = arith.constant 0 : i32
    %251 = arith.cmpi ne, %250, %c0_i32_104 : i32
    scf.if %251 {
      %c0_105 = arith.constant 0 : index
      %c0_106 = arith.constant 0 : index
      %c0_107 = arith.constant 0 : index
      %252 = vector.load %arg25[%c0_105, %c0_106, %c0_107] : memref<1x8x128xf32, #tpu.memory_space<vmem>>, vector<1x8x128xf32>
      %253 = vector.shape_cast %252 : vector<1x8x128xf32> to vector<8x128xf32>
      %c0_108 = arith.constant 0 : index
      %c0_109 = arith.constant 0 : index
      %254 = vector.load %arg16[%c0_108, %c0_109] : memref<128x128xf32, #tpu.memory_space<vmem>>, vector<128x128xf32>
      %cst_110 = arith.constant dense<0.000000e+00> : vector<8x128xf32>
      %255 = tpu.matmul %253, %254, %cst_110 {dimension_numbers = #tpu.dot_dimension_numbers<[1], [0], [0], [1], [0, 0, 1, 1], [], []>} : vector<8x128xf32>, vector<128x128xf32>, vector<8x128xf32> -> vector<8x128xf32>
      %c0_111 = arith.constant 0 : index
      %c0_112 = arith.constant 0 : index
      %256 = vector.load %arg17[%c0_111, %c0_112] : memref<1x128xf32, #tpu.memory_space<vmem>>, vector<1x128xf32>
      %257 = vector.shape_cast %256 : vector<1x128xf32> to vector<128xf32>
      %258 = vector.shape_cast %257 : vector<128xf32> to vector<1x128xf32>
      %259 = vector.broadcast %258 : vector<1x128xf32> to vector<8x128xf32>
      %260 = arith.addf %255, %259 : vector<8x128xf32>
      %c0_113 = arith.constant 0 : index
      %c0_114 = arith.constant 0 : index
      %261 = vector.load %arg18[%c0_113, %c0_114] : memref<1x128xf32, #tpu.memory_space<vmem>>, vector<1x128xf32>
      %262 = vector.shape_cast %261 : vector<1x128xf32> to vector<128xf32>
      %c0_115 = arith.constant 0 : index
      %c0_116 = arith.constant 0 : index
      %263 = vector.load %arg19[%c0_115, %c0_116] : memref<1x128xf32, #tpu.memory_space<vmem>>, vector<1x128xf32>
      %264 = vector.shape_cast %263 : vector<1x128xf32> to vector<128xf32>
      %cst_117 = arith.constant dense<0.000000e+00> : vector<8xf32>
      %265 = vector.multi_reduction <add>, %260, %cst_117 [1] : vector<8x128xf32> to vector<8xf32>
      %266 = vector.shape_cast %265 : vector<8xf32> to vector<8x1xf32>
      %267 = arith.mulf %260, %260 : vector<8x128xf32>
      %cst_118 = arith.constant dense<0.000000e+00> : vector<8xf32>
      %268 = vector.multi_reduction <add>, %267, %cst_118 [1] : vector<8x128xf32> to vector<8xf32>
      %269 = vector.shape_cast %268 : vector<8xf32> to vector<8x1xf32>
      %cst_119 = arith.constant 3.125000e-02 : f32
      %270 = vector.broadcast %cst_119 : f32 to vector<8x1xf32>
      %271 = arith.mulf %266, %270 : vector<8x1xf32>
      %cst_120 = arith.constant 3.125000e-02 : f32
      %272 = vector.broadcast %cst_120 : f32 to vector<8x1xf32>
      %273 = arith.mulf %269, %272 : vector<8x1xf32>
      %274 = arith.mulf %271, %271 : vector<8x1xf32>
      %275 = arith.subf %273, %274 : vector<8x1xf32>
      %cst_121 = arith.constant 0.000000e+00 : f32
      %276 = vector.broadcast %cst_121 : f32 to vector<8x1xf32>
      %277 = arith.maximumf %275, %276 : vector<8x1xf32>
      %278 = vector.broadcast %271 : vector<8x1xf32> to vector<8x128xf32>
      %279 = arith.subf %260, %278 : vector<8x128xf32>
      %cst_122 = arith.constant 9.99999974E-6 : f32
      %280 = vector.broadcast %cst_122 : f32 to vector<8x1xf32>
      %281 = arith.addf %277, %280 : vector<8x1xf32>
      %282 = math.rsqrt %281 : vector<8x1xf32>
      %283 = vector.broadcast %282 : vector<8x1xf32> to vector<8x128xf32>
      %284 = arith.mulf %279, %283 : vector<8x128xf32>
      %285 = vector.shape_cast %262 : vector<128xf32> to vector<1x128xf32>
      %286 = vector.broadcast %285 : vector<1x128xf32> to vector<8x128xf32>
      %287 = arith.mulf %284, %286 : vector<8x128xf32>
      %288 = vector.shape_cast %264 : vector<128xf32> to vector<1x128xf32>
      %289 = vector.broadcast %288 : vector<1x128xf32> to vector<8x128xf32>
      %290 = arith.addf %287, %289 : vector<8x128xf32>
      %cst_123 = arith.constant 5.000000e-01 : f32
      %291 = vector.broadcast %cst_123 : f32 to vector<8x128xf32>
      %292 = arith.mulf %291, %290 : vector<8x128xf32>
      %cst_124 = arith.constant 0.707106769 : f32
      %293 = vector.broadcast %cst_124 : f32 to vector<8x128xf32>
      %294 = arith.mulf %290, %293 : vector<8x128xf32>
      %cst_125 = arith.constant 0.000000e+00 : f32
      %295 = vector.broadcast %cst_125 : f32 to vector<8x128xf32>
      %296 = arith.cmpf oge, %294, %295 : vector<8x128xf32>
      %cst_126 = arith.constant 1.000000e+00 : f32
      %cst_127 = arith.constant -1.000000e+00 : f32
      %297 = vector.broadcast %cst_126 : f32 to vector<8x128xf32>
      %298 = vector.broadcast %cst_127 : f32 to vector<8x128xf32>
      %299 = arith.select %296, %297, %298 : vector<8x128xi1>, vector<8x128xf32>
      %300 = math.absf %294 : vector<8x128xf32>
      %cst_128 = arith.constant 0.327591091 : f32
      %301 = vector.broadcast %cst_128 : f32 to vector<8x128xf32>
      %302 = arith.mulf %301, %300 : vector<8x128xf32>
      %cst_129 = arith.constant 1.000000e+00 : f32
      %303 = vector.broadcast %cst_129 : f32 to vector<8x128xf32>
      %304 = arith.addf %303, %302 : vector<8x128xf32>
      %cst_130 = arith.constant 1.000000e+00 : f32
      %305 = vector.broadcast %cst_130 : f32 to vector<8x128xf32>
      %306 = arith.divf %305, %304 : vector<8x128xf32>
      %cst_131 = arith.constant 1.06140542 : f32
      %307 = vector.broadcast %cst_131 : f32 to vector<8x128xf32>
      %308 = arith.mulf %307, %306 : vector<8x128xf32>
      %cst_132 = arith.constant -1.45315206 : f32
      %309 = vector.broadcast %cst_132 : f32 to vector<8x128xf32>
      %310 = arith.addf %308, %309 : vector<8x128xf32>
      %311 = arith.mulf %310, %306 : vector<8x128xf32>
      %cst_133 = arith.constant 1.42141378 : f32
      %312 = vector.broadcast %cst_133 : f32 to vector<8x128xf32>
      %313 = arith.addf %311, %312 : vector<8x128xf32>
      %314 = arith.mulf %313, %306 : vector<8x128xf32>
      %cst_134 = arith.constant -0.284496725 : f32
      %315 = vector.broadcast %cst_134 : f32 to vector<8x128xf32>
      %316 = arith.addf %314, %315 : vector<8x128xf32>
      %317 = arith.mulf %316, %306 : vector<8x128xf32>
      %cst_135 = arith.constant 0.254829586 : f32
      %318 = vector.broadcast %cst_135 : f32 to vector<8x128xf32>
      %319 = arith.addf %317, %318 : vector<8x128xf32>
      %320 = arith.mulf %319, %306 : vector<8x128xf32>
      %cst_136 = arith.constant 0.000000e+00 : f32
      %321 = vector.broadcast %cst_136 : f32 to vector<8x128xf32>
      %322 = arith.subf %321, %300 : vector<8x128xf32>
      %323 = arith.mulf %322, %300 : vector<8x128xf32>
      %324 = math.exp %323 : vector<8x128xf32>
      %325 = arith.mulf %320, %324 : vector<8x128xf32>
      %cst_137 = arith.constant 1.000000e+00 : f32
      %326 = vector.broadcast %cst_137 : f32 to vector<8x128xf32>
      %327 = arith.subf %326, %325 : vector<8x128xf32>
      %328 = arith.mulf %299, %327 : vector<8x128xf32>
      %cst_138 = arith.constant 1.000000e+00 : f32
      %329 = vector.broadcast %cst_138 : f32 to vector<8x128xf32>
      %330 = arith.addf %329, %328 : vector<8x128xf32>
      %331 = arith.mulf %292, %330 : vector<8x128xf32>
      %c0_139 = arith.constant 0 : index
      %c0_140 = arith.constant 0 : index
      %332 = vector.load %arg20[%c0_139, %c0_140] : memref<128x128xf32, #tpu.memory_space<vmem>>, vector<128x128xf32>
      %cst_141 = arith.constant dense<0.000000e+00> : vector<8x128xf32>
      %333 = tpu.matmul %331, %332, %cst_141 {dimension_numbers = #tpu.dot_dimension_numbers<[1], [0], [0], [1], [0, 0, 1, 1], [], []>} : vector<8x128xf32>, vector<128x128xf32>, vector<8x128xf32> -> vector<8x128xf32>
      %c0_142 = arith.constant 0 : index
      %c0_143 = arith.constant 0 : index
      %334 = vector.load %arg21[%c0_142, %c0_143] : memref<1x128xf32, #tpu.memory_space<vmem>>, vector<1x128xf32>
      %335 = vector.shape_cast %334 : vector<1x128xf32> to vector<128xf32>
      %336 = vector.shape_cast %335 : vector<128xf32> to vector<1x128xf32>
      %337 = vector.broadcast %336 : vector<1x128xf32> to vector<8x128xf32>
      %338 = arith.addf %333, %337 : vector<8x128xf32>
      %c0_144 = arith.constant 0 : index
      %c0_145 = arith.constant 0 : index
      %339 = vector.load %arg22[%c0_144, %c0_145] : memref<1x128xf32, #tpu.memory_space<vmem>>, vector<1x128xf32>
      %340 = vector.shape_cast %339 : vector<1x128xf32> to vector<128xf32>
      %c0_146 = arith.constant 0 : index
      %c0_147 = arith.constant 0 : index
      %341 = vector.load %arg23[%c0_146, %c0_147] : memref<1x128xf32, #tpu.memory_space<vmem>>, vector<1x128xf32>
      %342 = vector.shape_cast %341 : vector<1x128xf32> to vector<128xf32>
      %cst_148 = arith.constant dense<0.000000e+00> : vector<8xf32>
      %343 = vector.multi_reduction <add>, %338, %cst_148 [1] : vector<8x128xf32> to vector<8xf32>
      %344 = vector.shape_cast %343 : vector<8xf32> to vector<8x1xf32>
      %345 = arith.mulf %338, %338 : vector<8x128xf32>
      %cst_149 = arith.constant dense<0.000000e+00> : vector<8xf32>
      %346 = vector.multi_reduction <add>, %345, %cst_149 [1] : vector<8x128xf32> to vector<8xf32>
      %347 = vector.shape_cast %346 : vector<8xf32> to vector<8x1xf32>
      %cst_150 = arith.constant 0.020833334 : f32
      %348 = vector.broadcast %cst_150 : f32 to vector<8x1xf32>
      %349 = arith.mulf %344, %348 : vector<8x1xf32>
      %cst_151 = arith.constant 0.020833334 : f32
      %350 = vector.broadcast %cst_151 : f32 to vector<8x1xf32>
      %351 = arith.mulf %347, %350 : vector<8x1xf32>
      %352 = arith.mulf %349, %349 : vector<8x1xf32>
      %353 = arith.subf %351, %352 : vector<8x1xf32>
      %cst_152 = arith.constant 0.000000e+00 : f32
      %354 = vector.broadcast %cst_152 : f32 to vector<8x1xf32>
      %355 = arith.maximumf %353, %354 : vector<8x1xf32>
      %356 = vector.broadcast %349 : vector<8x1xf32> to vector<8x128xf32>
      %357 = arith.subf %338, %356 : vector<8x128xf32>
      %cst_153 = arith.constant 9.99999974E-6 : f32
      %358 = vector.broadcast %cst_153 : f32 to vector<8x1xf32>
      %359 = arith.addf %355, %358 : vector<8x1xf32>
      %360 = math.rsqrt %359 : vector<8x1xf32>
      %361 = vector.broadcast %360 : vector<8x1xf32> to vector<8x128xf32>
      %362 = arith.mulf %357, %361 : vector<8x128xf32>
      %363 = vector.shape_cast %340 : vector<128xf32> to vector<1x128xf32>
      %364 = vector.broadcast %363 : vector<1x128xf32> to vector<8x128xf32>
      %365 = arith.mulf %362, %364 : vector<8x128xf32>
      %366 = vector.shape_cast %342 : vector<128xf32> to vector<1x128xf32>
      %367 = vector.broadcast %366 : vector<1x128xf32> to vector<8x128xf32>
      %368 = arith.addf %365, %367 : vector<8x128xf32>
      %369 = vector.shape_cast %368 : vector<8x128xf32> to vector<1x8x128xf32>
      %c0_154 = arith.constant 0 : index
      %c0_155 = arith.constant 0 : index
      %c0_156 = arith.constant 0 : index
      %370 = vector.load %arg24[%c0_154, %c0_155, %c0_156] : memref<1x8x128xf32, #tpu.memory_space<vmem>>, vector<1x8x128xf32>
      tpu.vector_store %arg24[%c0_154, %c0_155, %c0_156], %369 {strides = array<i32>} : memref<1x8x128xf32, #tpu.memory_space<vmem>>, vector<1x8x128xf32>,
    } else {
    }
    return
  }
  func.func @transform_0(%arg0: i32, %arg1: i32) -> (i32, i32, i32) {
    %c0_i32 = arith.constant 0 : i32
    %c0_i32_0 = arith.constant 0 : i32
    return %arg0, %arg1, %c0_i32 : i32, i32, i32
  }
  func.func @transform_1(%arg0: i32, %arg1: i32) -> (i32, i32) {
    %c0_i32 = arith.constant 0 : i32
    %c0_i32_0 = arith.constant 0 : i32
    return %arg1, %c0_i32 : i32, i32
  }
  func.func @transform_2(%arg0: i32, %arg1: i32) -> (i32, i32) {
    %c0_i32 = arith.constant 0 : i32
    %c0_i32_0 = arith.constant 0 : i32
    %c0_i32_1 = arith.constant 0 : i32
    return %c0_i32, %c0_i32_0 : i32, i32
  }
  func.func @transform_3(%arg0: i32, %arg1: i32) -> (i32, i32) {
    %c0_i32 = arith.constant 0 : i32
    %c0_i32_0 = arith.constant 0 : i32
    %c0_i32_1 = arith.constant 0 : i32
    return %c0_i32, %c0_i32_0 : i32, i32
  }
  func.func @transform_4(%arg0: i32, %arg1: i32) -> (i32, i32) {
    %c0_i32 = arith.constant 0 : i32
    %c0_i32_0 = arith.constant 0 : i32
    %c0_i32_1 = arith.constant 0 : i32
    return %c0_i32, %c0_i32_0 : i32, i32
  }
  func.func @transform_5(%arg0: i32, %arg1: i32) -> (i32, i32) {
    %c0_i32 = arith.constant 0 : i32
    %c0_i32_0 = arith.constant 0 : i32
    %c0_i32_1 = arith.constant 0 : i32
    return %c0_i32, %c0_i32_0 : i32, i32
  }
  func.func @transform_6(%arg0: i32, %arg1: i32) -> (i32, i32) {
    %c0_i32 = arith.constant 0 : i32
    %c0_i32_0 = arith.constant 0 : i32
    %c0_i32_1 = arith.constant 0 : i32
    return %c0_i32, %c0_i32_0 : i32, i32
  }
  func.func @transform_7(%arg0: i32, %arg1: i32) -> (i32, i32) {
    %c0_i32 = arith.constant 0 : i32
    %c0_i32_0 = arith.constant 0 : i32
    %c0_i32_1 = arith.constant 0 : i32
    return %c0_i32, %c0_i32_0 : i32, i32
  }
  func.func @transform_8(%arg0: i32, %arg1: i32) -> (i32, i32) {
    %c0_i32 = arith.constant 0 : i32
    %c0_i32_0 = arith.constant 0 : i32
    %c0_i32_1 = arith.constant 0 : i32
    return %c0_i32, %c0_i32_0 : i32, i32
  }
  func.func @transform_9(%arg0: i32, %arg1: i32) -> (i32, i32) {
    %c0_i32 = arith.constant 0 : i32
    %c0_i32_0 = arith.constant 0 : i32
    %c0_i32_1 = arith.constant 0 : i32
    return %c0_i32, %c0_i32_0 : i32, i32
  }
  func.func @transform_10(%arg0: i32, %arg1: i32) -> (i32, i32) {
    %c0_i32 = arith.constant 0 : i32
    %c0_i32_0 = arith.constant 0 : i32
    %c0_i32_1 = arith.constant 0 : i32
    return %c0_i32, %c0_i32_0 : i32, i32
  }
  func.func @transform_11(%arg0: i32, %arg1: i32) -> (i32, i32) {
    %c0_i32 = arith.constant 0 : i32
    %c0_i32_0 = arith.constant 0 : i32
    %c0_i32_1 = arith.constant 0 : i32
    return %c0_i32, %c0_i32_0 : i32, i32
  }
  func.func @transform_12(%arg0: i32, %arg1: i32) -> (i32, i32) {
    %c0_i32 = arith.constant 0 : i32
    %c0_i32_0 = arith.constant 0 : i32
    %c0_i32_1 = arith.constant 0 : i32
    return %c0_i32, %c0_i32_0 : i32, i32
  }
  func.func @transform_13(%arg0: i32, %arg1: i32) -> (i32, i32) {
    %c0_i32 = arith.constant 0 : i32
    %c0_i32_0 = arith.constant 0 : i32
    %c0_i32_1 = arith.constant 0 : i32
    return %c0_i32, %c0_i32_0 : i32, i32
  }
  func.func @transform_14(%arg0: i32, %arg1: i32) -> (i32, i32) {
    %c0_i32 = arith.constant 0 : i32
    %c0_i32_0 = arith.constant 0 : i32
    %c0_i32_1 = arith.constant 0 : i32
    return %c0_i32, %c0_i32_0 : i32, i32
  }
  func.func @transform_15(%arg0: i32, %arg1: i32) -> (i32, i32) {
    %c0_i32 = arith.constant 0 : i32
    %c0_i32_0 = arith.constant 0 : i32
    %c0_i32_1 = arith.constant 0 : i32
    return %c0_i32, %c0_i32_0 : i32, i32
  }
  func.func @transform_16(%arg0: i32, %arg1: i32) -> (i32, i32) {
    %c0_i32 = arith.constant 0 : i32
    %c0_i32_0 = arith.constant 0 : i32
    %c0_i32_1 = arith.constant 0 : i32
    return %c0_i32, %c0_i32_0 : i32, i32
  }
  func.func @transform_17(%arg0: i32, %arg1: i32) -> (i32, i32) {
    %c0_i32 = arith.constant 0 : i32
    %c0_i32_0 = arith.constant 0 : i32
    %c0_i32_1 = arith.constant 0 : i32
    return %c0_i32, %c0_i32_0 : i32, i32
  }
  func.func @transform_18(%arg0: i32, %arg1: i32) -> (i32, i32) {
    %c0_i32 = arith.constant 0 : i32
    %c0_i32_0 = arith.constant 0 : i32
    %c0_i32_1 = arith.constant 0 : i32
    return %c0_i32, %c0_i32_0 : i32, i32
  }
  func.func @transform_19(%arg0: i32, %arg1: i32) -> (i32, i32) {
    %c0_i32 = arith.constant 0 : i32
    %c0_i32_0 = arith.constant 0 : i32
    %c0_i32_1 = arith.constant 0 : i32
    return %c0_i32, %c0_i32_0 : i32, i32
  }
  func.func @transform_20(%arg0: i32, %arg1: i32) -> (i32, i32) {
    %c0_i32 = arith.constant 0 : i32
    %c0_i32_0 = arith.constant 0 : i32
    %c0_i32_1 = arith.constant 0 : i32
    return %c0_i32, %c0_i32_0 : i32, i32
  }
  func.func @transform_21(%arg0: i32, %arg1: i32) -> (i32, i32) {
    %c0_i32 = arith.constant 0 : i32
    %c0_i32_0 = arith.constant 0 : i32
    %c0_i32_1 = arith.constant 0 : i32
    return %c0_i32, %c0_i32_0 : i32, i32
  }
  func.func @transform_22(%arg0: i32, %arg1: i32) -> (i32, i32, i32) {
    %c0_i32 = arith.constant 0 : i32
    %c0_i32_0 = arith.constant 0 : i32
    %c0_i32_1 = arith.constant 0 : i32
    return %arg0, %c0_i32, %c0_i32_0 : i32, i32, i32
  }
}

</mosaic_0001>

<llo_original>
// kernel: tpu_custom_call.1
$region0: #{tpu_custom_call.1}
  #allocation0 [shape = 'u32[]', space=smem, size = 0x4, offset = 0x4, fixed_abs, tag = 'smem constant byte address 0x4 - core index']
  #allocation1 [shape = 'u32[72,128]{1,0:T(1,128)}', space=vmem, size = 0x9000, scoped, tag = 'internal scratch']
  #allocation2 [shape = 'f32[1,8,128]{2,1,0:T(8,128)}', space=vmem, size = 0x1000, scoped, tag = 'scratch operand']
  %s0 = inlined_call_operand.hbm [shape: f32[2,16,128], index: 0, kind: input, shape index: {}]
  %s1 = inlined_call_operand.vmem [shape: f32[16,8], index: 1, kind: input, shape index: {}]
  %s2 = inlined_call_operand.hbm [shape: f32[128,128], index: 2, kind: input, shape index: {}]
  %s3 = inlined_call_operand.vmem [shape: f32[1,128], index: 3, kind: input, shape index: {}]
  %s4 = inlined_call_operand.vmem [shape: f32[1,128], index: 4, kind: input, shape index: {}]
  %s5 = inlined_call_operand.vmem [shape: f32[1,128], index: 5, kind: input, shape index: {}]
  %s6 = inlined_call_operand.hbm [shape: f32[128,128], index: 6, kind: input, shape index: {}]
  %s7 = inlined_call_operand.vmem [shape: f32[1,128], index: 7, kind: input, shape index: {}]
  %s8 = inlined_call_operand.vmem [shape: f32[1,128], index: 8, kind: input, shape index: {}]
  %s9 = inlined_call_operand.vmem [shape: f32[1,128], index: 9, kind: input, shape index: {}]
  %s10 = inlined_call_operand.hbm [shape: f32[128,128], index: 10, kind: input, shape index: {}]
  %s11 = inlined_call_operand.vmem [shape: f32[1,128], index: 11, kind: input, shape index: {}]
  %s12 = inlined_call_operand.vmem [shape: f32[1,128], index: 12, kind: input, shape index: {}]
  %s13 = inlined_call_operand.vmem [shape: f32[1,128], index: 13, kind: input, shape index: {}]
  %s14 = inlined_call_operand.hbm [shape: f32[128,128], index: 14, kind: input, shape index: {}]
  %s15 = inlined_call_operand.vmem [shape: f32[1,128], index: 15, kind: input, shape index: {}]
  %s16 = inlined_call_operand.vmem [shape: f32[1,128], index: 16, kind: input, shape index: {}]
  %s17 = inlined_call_operand.vmem [shape: f32[1,128], index: 17, kind: input, shape index: {}]
  %s18 = inlined_call_operand.hbm [shape: f32[128,128], index: 18, kind: input, shape index: {}]
  %s19 = inlined_call_operand.vmem [shape: f32[1,128], index: 19, kind: input, shape index: {}]
  %s20 = inlined_call_operand.vmem [shape: f32[1,128], index: 20, kind: input, shape index: {}]
  %s21 = inlined_call_operand.vmem [shape: f32[1,128], index: 21, kind: input, shape index: {}]
  %s22 = inlined_call_operand.hbm [shape: f32[2,8,128], index: 22, kind: output, shape index: {}]
  %s23 = sld [smem:[#allocation0]]
  $region153: #{tpu_custom_call.1} parent=0
    _
  %s25 = ssub.s32 1, %s23
  %s26 = scalar_select 0, %s25, %s23
  $region1: #{tpu_custom_call.1} parent=0
    #allocation3 [shape = 'u8[8192]{0}', space=vmem, size = 0x2000, scoped, tag = 'input window, operand 0']
    #allocation4 [shape = 's32[2]{0}', space=sflag, size = 0x8, scoped, tag = 'scoped memory for tpu_custom_call.1']
    #allocation5 [shape = 's32[2]{0}', space=sflag, size = 0x8, scoped, tag = 'scoped memory for tpu_custom_call.1']
    #allocation6 [shape = 'u8[65536]{0}', space=vmem, size = 0x10000, scoped, tag = 'input window, operand 2, single buffered']
    #allocation7 [shape = 's32[1]{0}', space=sflag, size = 0x4, scoped, tag = 'scoped memory for tpu_custom_call.1']
    #allocation8 [shape = 'u8[65536]{0}', space=vmem, size = 0x10000, scoped, tag = 'input window, operand 6, single buffered']
    #allocation9 [shape = 'u8[65536]{0}', space=vmem, size = 0x10000, scoped, tag = 'input window, operand 10, single buffered']
    #allocation10 [shape = 's32[1]{0}', space=sflag, size = 0x4, scoped, tag = 'scoped memory for tpu_custom_call.1']
    #allocation11 [shape = 'u8[65536]{0}', space=vmem, size = 0x10000, scoped, tag = 'input window, operand 14, single buffered']
    #allocation12 [shape = 'u8[65536]{0}', space=vmem, size = 0x10000, scoped, tag = 'input window, operand 18, single buffered']
    #allocation13 [shape = 's32[1]{0}', space=sflag, size = 0x4, scoped, tag = 'scoped memory for tpu_custom_call.1']
    #allocation14 [shape = 'u8[8192]{0}', space=vmem, size = 0x2000, scoped, tag = 'output window, operand 0']
    %27 = vsyncpa [#allocation4], 0
    %s28 = scalar_lea.sflag [#allocation4], 1
    %29 = vsyncpa %s28, 0
    %30 = vsyncpa [#allocation7], 0
    %31 = vsyncpa [#allocation10], 0
    %32 = vsyncpa [#allocation13], 0
    %33 = vsyncpa [#allocation5], 0
    %s34 = scalar_lea.sflag [#allocation5], 1
    %35 = vsyncpa %s34, 0
    loop: start=0, step=1, limit=6
    $region2: #{tpu_custom_call.1} parent=1 // loop_pre_header
      _
    $region3: #{tpu_custom_call.1} parent=1 // loop_header
      %s37 = sphi 0, %s41
      %p38 = scmp.ge.s32.totalorder %s37, 6
      %s44 = sphi 0, %s56
      %s45 = sphi 0, %s52
      %s46 = sphi 0, %s44
      %s47 = sphi 0, %s45
      %s48 = sphi 0, %s46
      %s49 = sphi 0, %s47
      %s61 = sphi 0, %s63
      %s64 = sphi 0, %s61
      %s65 = sphi 0, %s64
      %s81 = sphi 0, %s65
      %s87 = sphi 0, %s89
      %s90 = sphi 0, %s87
      %s91 = sphi 0, %s90
      %s107 = sphi 0, %s91
      %s111 = sphi 0, %s111
      %s113 = sphi 0, %s111
      %s114 = sphi 0, %s113
      %s128 = sphi 0, %s114
      %s132 = sphi 0, %s132
      %s134 = sphi 0, %s132
      %s135 = sphi 0, %s134
      %s149 = sphi 0, %s135
      %s153 = sphi 0, %s153
      %s155 = sphi 0, %s153
      %s156 = sphi 0, %s155
      %s170 = sphi 0, %s156
      %s174 = sphi 0, %s174
      %s176 = sphi 0, %s174
      %s177 = sphi 0, %s176
      %s191 = sphi 0, %s177
      %s195 = sphi 0, %s195
      %s197 = sphi 0, %s195
      %s198 = sphi 0, %s197
      %s212 = sphi 0, %s198
      %s216 = sphi 0, %s216
      %s218 = sphi 0, %s216
      %s219 = sphi 0, %s218
      %s233 = sphi 0, %s219
      %s237 = sphi 0, %s237
      %s239 = sphi 0, %s237
      %s240 = sphi 0, %s239
      %s254 = sphi 0, %s240
      %s258 = sphi 0, %s258
      %s260 = sphi 0, %s258
      %s261 = sphi 0, %s260
      %s275 = sphi 0, %s261
      %s279 = sphi 0, %s279
      %s281 = sphi 0, %s279
      %s282 = sphi 0, %s281
      %s296 = sphi 0, %s282
      %s300 = sphi 0, %s300
      %s302 = sphi 0, %s300
      %s303 = sphi 0, %s302
      %s317 = sphi 0, %s303
      %s321 = sphi 0, %s321
      %s323 = sphi 0, %s321
      %s324 = sphi 0, %s323
      %s338 = sphi 0, %s324
      %s342 = sphi 0, %s342
      %s344 = sphi 0, %s342
      %s345 = sphi 0, %s344
      %s359 = sphi 0, %s345
      %s363 = sphi 0, %s363
      %s365 = sphi 0, %s363
      %s366 = sphi 0, %s365
      %s380 = sphi 0, %s366
      %s384 = sphi 0, %s384
      %s386 = sphi 0, %s384
      %s387 = sphi 0, %s386
      %s401 = sphi 0, %s387
      %s405 = sphi 0, %s405
      %s407 = sphi 0, %s405
      %s408 = sphi 0, %s407
      %s422 = sphi 0, %s408
      %s426 = sphi 0, %s426
      %s428 = sphi 0, %s426
      %s429 = sphi 0, %s428
      %s443 = sphi 0, %s429
      %s447 = sphi 0, %s447
      %s449 = sphi 0, %s447
      %s450 = sphi 0, %s449
      %s464 = sphi 0, %s450
      %s468 = sphi 0, %s468
      %s470 = sphi 0, %s468
      %s471 = sphi 0, %s470
      %s485 = sphi 0, %s471
      %s489 = sphi 0, %s489
      %s491 = sphi 0, %s489
      %s492 = sphi 0, %s491
      %s506 = sphi 0, %s492
      %s510 = sphi 0, %s510
      %s512 = sphi 0, %s510
      %s513 = sphi 0, %s512
      %s527 = sphi 0, %s513
      %s533 = sphi 0, %s535
      %s536 = sphi 0, %s533
      %s537 = sphi 0, %s536
      %s553 = sphi 0, %s537
    $region4: #{tpu_custom_call.1} parent=1 // loop_header_branch
      %40 = sbr.rel (%p38) target = $region8
    $region5: #{tpu_custom_call.1} parent=1 // loop_body
      %s42 = ssub.s32 %s37, 1
      %s43 = ssub.s32 %s37, 2
      %s50 = sadd.s32 1, %s45
      %p51 = scmp.ge.s32.totalorder %s50, 2
      %s52 = scalar_select %p51, 0, %s50
      %s53 = sadd.s32 1, %s44
      %s54 = scalar_select %p51, %s53, %s44
      %p55 = scmp.ge.s32.totalorder %s54, 2
      %s56 = scalar_select %p55, 0, %s54
      %s57 = ssub.s32 %s44, %s56
      %s58 = ssub.s32 %s45, %s52
      %s59 = sor.u32 %s57, %s58
      %p60 = scmp.eq.s32.totalorder %s59, 0
      %s62 = sadd.s32 %s61, 1
      %s63 = scalar_select %p60, %s61, %s62
      %p66 = pneg %p60
      %p67 = scmp.eq.s32.totalorder %s37, 3
      %p68 = por %p66, %p67
      %p69 = scmp.ne.s32.totalorder %s61, %s64
      %p70 = scmp.eq.s32.totalorder %s37, 0
      %p71 = por %p69, %p70
      %p72 = scmp.ne.s32.totalorder %s61, %s64
      %p73 = scmp.eq.s32.totalorder %s42, 3
      %p74 = por %p72, %p73
      %p75 = scmp.ne.s32.totalorder %s64, %s65
      %p76 = scmp.eq.s32.totalorder %s42, 0
      %p77 = por %p75, %p76
      %p78 = scmp.ne.s32.totalorder %s64, %s65
      %p79 = scmp.eq.s32.totalorder %s43, 3
      %p80 = por %p78, %p79
      %p82 = scmp.ne.s32.totalorder %s65, %s81
      %p83 = scmp.eq.s32.totalorder %s43, 0
      %p84 = por %p82, %p83
      %s85 = ssub.s32 %s45, %s52
      %p86 = scmp.eq.s32.totalorder %s85, 0
      %s88 = sadd.s32 %s87, 1
      %s89 = scalar_select %p86, %s87, %s88
      %p92 = pneg %p86
      %p93 = scmp.eq.s32.totalorder %s37, 3
      %p94 = por %p92, %p93
      %p95 = scmp.ne.s32.totalorder %s87, %s90
      %p96 = scmp.eq.s32.totalorder %s37, 0
      %p97 = por %p95, %p96
      %p98 = scmp.ne.s32.totalorder %s87, %s90
      %p99 = scmp.eq.s32.totalorder %s42, 3
      %p100 = por %p98, %p99
      %p101 = scmp.ne.s32.totalorder %s90, %s91
      %p102 = scmp.eq.s32.totalorder %s42, 0
      %p103 = por %p101, %p102
      %p104 = scmp.ne.s32.totalorder %s90, %s91
      %p105 = scmp.eq.s32.totalorder %s43, 3
      %p106 = por %p104, %p105
      %p108 = scmp.ne.s32.totalorder %s91, %s107
      %p109 = scmp.eq.s32.totalorder %s43, 0
      %p110 = por %p108, %p109
      %s112 = sadd.s32 %s111, 1
      %p115 = scmp.eq.s32.totalorder %s37, 3
      %p116 = scmp.ne.s32.totalorder %s111, %s113
      %p117 = scmp.eq.s32.totalorder %s37, 0
      %p118 = por %p116, %p117
      %p119 = scmp.ne.s32.totalorder %s111, %s113
      %p120 = scmp.eq.s32.totalorder %s42, 3
      %p121 = por %p119, %p120
      %p122 = scmp.ne.s32.totalorder %s113, %s114
      %p123 = scmp.eq.s32.totalorder %s42, 0
      %p124 = por %p122, %p123
      %p125 = scmp.ne.s32.totalorder %s113, %s114
      %p126 = scmp.eq.s32.totalorder %s43, 3
      %p127 = por %p125, %p126
      %p129 = scmp.ne.s32.totalorder %s114, %s128
      %p130 = scmp.eq.s32.totalorder %s43, 0
      %p131 = por %p129, %p130
      %s133 = sadd.s32 %s132, 1
      %p136 = scmp.eq.s32.totalorder %s37, 3
      %p137 = scmp.ne.s32.totalorder %s132, %s134
      %p138 = scmp.eq.s32.totalorder %s37, 0
      %p139 = por %p137, %p138
      %p140 = scmp.ne.s32.totalorder %s132, %s134
      %p141 = scmp.eq.s32.totalorder %s42, 3
      %p142 = por %p140, %p141
      %p143 = scmp.ne.s32.totalorder %s134, %s135
      %p144 = scmp.eq.s32.totalorder %s42, 0
      %p145 = por %p143, %p144
      %p146 = scmp.ne.s32.totalorder %s134, %s135
      %p147 = scmp.eq.s32.totalorder %s43, 3
      %p148 = por %p146, %p147
      %p150 = scmp.ne.s32.totalorder %s135, %s149
      %p151 = scmp.eq.s32.totalorder %s43, 0
      %p152 = por %p150, %p151
      %s154 = sadd.s32 %s153, 1
      %p157 = scmp.eq.s32.totalorder %s37, 3
      %p158 = scmp.ne.s32.totalorder %s153, %s155
      %p159 = scmp.eq.s32.totalorder %s37, 0
      %p160 = por %p158, %p159
      %p161 = scmp.ne.s32.totalorder %s153, %s155
      %p162 = scmp.eq.s32.totalorder %s42, 3
      %p163 = por %p161, %p162
      %p164 = scmp.ne.s32.totalorder %s155, %s156
      %p165 = scmp.eq.s32.totalorder %s42, 0
      %p166 = por %p164, %p165
      %p167 = scmp.ne.s32.totalorder %s155, %s156
      %p168 = scmp.eq.s32.totalorder %s43, 3
      %p169 = por %p167, %p168
      %p171 = scmp.ne.s32.totalorder %s156, %s170
      %p172 = scmp.eq.s32.totalorder %s43, 0
      %p173 = por %p171, %p172
      %s175 = sadd.s32 %s174, 1
      %p178 = scmp.eq.s32.totalorder %s37, 3
      %p179 = scmp.ne.s32.totalorder %s174, %s176
      %p180 = scmp.eq.s32.totalorder %s37, 0
      %p181 = por %p179, %p180
      %p182 = scmp.ne.s32.totalorder %s174, %s176
      %p183 = scmp.eq.s32.totalorder %s42, 3
      %p184 = por %p182, %p183
      %p185 = scmp.ne.s32.totalorder %s176, %s177
      %p186 = scmp.eq.s32.totalorder %s42, 0
      %p187 = por %p185, %p186
      %p188 = scmp.ne.s32.totalorder %s176, %s177
      %p189 = scmp.eq.s32.totalorder %s43, 3
      %p190 = por %p188, %p189
      %p192 = scmp.ne.s32.totalorder %s177, %s191
      %p193 = scmp.eq.s32.totalorder %s43, 0
      %p194 = por %p192, %p193
      %s196 = sadd.s32 %s195, 1
      %p199 = scmp.eq.s32.totalorder %s37, 3
      %p200 = scmp.ne.s32.totalorder %s195, %s197
      %p201 = scmp.eq.s32.totalorder %s37, 0
      %p202 = por %p200, %p201
      %p203 = scmp.ne.s32.totalorder %s195, %s197
      %p204 = scmp.eq.s32.totalorder %s42, 3
      %p205 = por %p203, %p204
      %p206 = scmp.ne.s32.totalorder %s197, %s198
      %p207 = scmp.eq.s32.totalorder %s42, 0
      %p208 = por %p206, %p207
      %p209 = scmp.ne.s32.totalorder %s197, %s198
      %p210 = scmp.eq.s32.totalorder %s43, 3
      %p211 = por %p209, %p210
      %p213 = scmp.ne.s32.totalorder %s198, %s212
      %p214 = scmp.eq.s32.totalorder %s43, 0
      %p215 = por %p213, %p214
      %s217 = sadd.s32 %s216, 1
      %p220 = scmp.eq.s32.totalorder %s37, 3
      %p221 = scmp.ne.s32.totalorder %s216, %s218
      %p222 = scmp.eq.s32.totalorder %s37, 0
      %p223 = por %p221, %p222
      %p224 = scmp.ne.s32.totalorder %s216, %s218
      %p225 = scmp.eq.s32.totalorder %s42, 3
      %p226 = por %p224, %p225
      %p227 = scmp.ne.s32.totalorder %s218, %s219
      %p228 = scmp.eq.s32.totalorder %s42, 0
      %p229 = por %p227, %p228
      %p230 = scmp.ne.s32.totalorder %s218, %s219
      %p231 = scmp.eq.s32.totalorder %s43, 3
      %p232 = por %p230, %p231
      %p234 = scmp.ne.s32.totalorder %s219, %s233
      %p235 = scmp.eq.s32.totalorder %s43, 0
      %p236 = por %p234, %p235
      %s238 = sadd.s32 %s237, 1
      %p241 = scmp.eq.s32.totalorder %s37, 3
      %p242 = scmp.ne.s32.totalorder %s237, %s239
      %p243 = scmp.eq.s32.totalorder %s37, 0
      %p244 = por %p242, %p243
      %p245 = scmp.ne.s32.totalorder %s237, %s239
      %p246 = scmp.eq.s32.totalorder %s42, 3
      %p247 = por %p245, %p246
      %p248 = scmp.ne.s32.totalorder %s239, %s240
      %p249 = scmp.eq.s32.totalorder %s42, 0
      %p250 = por %p248, %p249
      %p251 = scmp.ne.s32.totalorder %s239, %s240
      %p252 = scmp.eq.s32.totalorder %s43, 3
      %p253 = por %p251, %p252
      %p255 = scmp.ne.s32.totalorder %s240, %s254
      %p256 = scmp.eq.s32.totalorder %s43, 0
      %p257 = por %p255, %p256
      %s259 = sadd.s32 %s258, 1
      %p262 = scmp.eq.s32.totalorder %s37, 3
      %p263 = scmp.ne.s32.totalorder %s258, %s260
      %p264 = scmp.eq.s32.totalorder %s37, 0
      %p265 = por %p263, %p264
      %p266 = scmp.ne.s32.totalorder %s258, %s260
      %p267 = scmp.eq.s32.totalorder %s42, 3
      %p268 = por %p266, %p267
      %p269 = scmp.ne.s32.totalorder %s260, %s261
      %p270 = scmp.eq.s32.totalorder %s42, 0
      %p271 = por %p269, %p270
      %p272 = scmp.ne.s32.totalorder %s260, %s261
      %p273 = scmp.eq.s32.totalorder %s43, 3
      %p274 = por %p272, %p273
      %p276 = scmp.ne.s32.totalorder %s261, %s275
      %p277 = scmp.eq.s32.totalorder %s43, 0
      %p278 = por %p276, %p277
      %s280 = sadd.s32 %s279, 1
      %p283 = scmp.eq.s32.totalorder %s37, 3
      %p284 = scmp.ne.s32.totalorder %s279, %s281
      %p285 = scmp.eq.s32.totalorder %s37, 0
      %p286 = por %p284, %p285
      %p287 = scmp.ne.s32.totalorder %s279, %s281
      %p288 = scmp.eq.s32.totalorder %s42, 3
      %p289 = por %p287, %p288
      %p290 = scmp.ne.s32.totalorder %s281, %s282
      %p291 = scmp.eq.s32.totalorder %s42, 0
      %p292 = por %p290, %p291
      %p293 = scmp.ne.s32.totalorder %s281, %s282
      %p294 = scmp.eq.s32.totalorder %s43, 3
      %p295 = por %p293, %p294
      %p297 = scmp.ne.s32.totalorder %s282, %s296
      %p298 = scmp.eq.s32.totalorder %s43, 0
      %p299 = por %p297, %p298
      %s301 = sadd.s32 %s300, 1
      %p304 = scmp.eq.s32.totalorder %s37, 3
      %p305 = scmp.ne.s32.totalorder %s300, %s302
      %p306 = scmp.eq.s32.totalorder %s37, 0
      %p307 = por %p305, %p306
      %p308 = scmp.ne.s32.totalorder %s300, %s302
      %p309 = scmp.eq.s32.totalorder %s42, 3
      %p310 = por %p308, %p309
      %p311 = scmp.ne.s32.totalorder %s302, %s303
      %p312 = scmp.eq.s32.totalorder %s42, 0
      %p313 = por %p311, %p312
      %p314 = scmp.ne.s32.totalorder %s302, %s303
      %p315 = scmp.eq.s32.totalorder %s43, 3
      %p316 = por %p314, %p315
      %p318 = scmp.ne.s32.totalorder %s303, %s317
      %p319 = scmp.eq.s32.totalorder %s43, 0
      %p320 = por %p318, %p319
      %s322 = sadd.s32 %s321, 1
      %p325 = scmp.eq.s32.totalorder %s37, 3
      %p326 = scmp.ne.s32.totalorder %s321, %s323
      %p327 = scmp.eq.s32.totalorder %s37, 0
      %p328 = por %p326, %p327
      %p329 = scmp.ne.s32.totalorder %s321, %s323
      %p330 = scmp.eq.s32.totalorder %s42, 3
      %p331 = por %p329, %p330
      %p332 = scmp.ne.s32.totalorder %s323, %s324
      %p333 = scmp.eq.s32.totalorder %s42, 0
      %p334 = por %p332, %p333
      %p335 = scmp.ne.s32.totalorder %s323, %s324
      %p336 = scmp.eq.s32.totalorder %s43, 3
      %p337 = por %p335, %p336
      %p339 = scmp.ne.s32.totalorder %s324, %s338
      %p340 = scmp.eq.s32.totalorder %s43, 0
      %p341 = por %p339, %p340
      %s343 = sadd.s32 %s342, 1
      %p346 = scmp.eq.s32.totalorder %s37, 3
      %p347 = scmp.ne.s32.totalorder %s342, %s344
      %p348 = scmp.eq.s32.totalorder %s37, 0
      %p349 = por %p347, %p348
      %p350 = scmp.ne.s32.totalorder %s342, %s344
      %p351 = scmp.eq.s32.totalorder %s42, 3
      %p352 = por %p350, %p351
      %p353 = scmp.ne.s32.totalorder %s344, %s345
      %p354 = scmp.eq.s32.totalorder %s42, 0
      %p355 = por %p353, %p354
      %p356 = scmp.ne.s32.totalorder %s344, %s345
      %p357 = scmp.eq.s32.totalorder %s43, 3
      %p358 = por %p356, %p357
      %p360 = scmp.ne.s32.totalorder %s345, %s359
      %p361 = scmp.eq.s32.totalorder %s43, 0
      %p362 = por %p360, %p361
      %s364 = sadd.s32 %s363, 1
      %p367 = scmp.eq.s32.totalorder %s37, 3
      %p368 = scmp.ne.s32.totalorder %s363, %s365
      %p369 = scmp.eq.s32.totalorder %s37, 0
      %p370 = por %p368, %p369
      %p371 = scmp.ne.s32.totalorder %s363, %s365
      %p372 = scmp.eq.s32.totalorder %s42, 3
      %p373 = por %p371, %p372
      %p374 = scmp.ne.s32.totalorder %s365, %s366
      %p375 = scmp.eq.s32.totalorder %s42, 0
      %p376 = por %p374, %p375
      %p377 = scmp.ne.s32.totalorder %s365, %s366
      %p378 = scmp.eq.s32.totalorder %s43, 3
      %p379 = por %p377, %p378
      %p381 = scmp.ne.s32.totalorder %s366, %s380
      %p382 = scmp.eq.s32.totalorder %s43, 0
      %p383 = por %p381, %p382
      %s385 = sadd.s32 %s384, 1
      %p388 = scmp.eq.s32.totalorder %s37, 3
      %p389 = scmp.ne.s32.totalorder %s384, %s386
      %p390 = scmp.eq.s32.totalorder %s37, 0
      %p391 = por %p389, %p390
      %p392 = scmp.ne.s32.totalorder %s384, %s386
      %p393 = scmp.eq.s32.totalorder %s42, 3
      %p394 = por %p392, %p393
      %p395 = scmp.ne.s32.totalorder %s386, %s387
      %p396 = scmp.eq.s32.totalorder %s42, 0
      %p397 = por %p395, %p396
      %p398 = scmp.ne.s32.totalorder %s386, %s387
      %p399 = scmp.eq.s32.totalorder %s43, 3
      %p400 = por %p398, %p399
      %p402 = scmp.ne.s32.totalorder %s387, %s401
      %p403 = scmp.eq.s32.totalorder %s43, 0
      %p404 = por %p402, %p403
      %s406 = sadd.s32 %s405, 1
      %p409 = scmp.eq.s32.totalorder %s37, 3
      %p410 = scmp.ne.s32.totalorder %s405, %s407
      %p411 = scmp.eq.s32.totalorder %s37, 0
      %p412 = por %p410, %p411
      %p413 = scmp.ne.s32.totalorder %s405, %s407
      %p414 = scmp.eq.s32.totalorder %s42, 3
      %p415 = por %p413, %p414
      %p416 = scmp.ne.s32.totalorder %s407, %s408
      %p417 = scmp.eq.s32.totalorder %s42, 0
      %p418 = por %p416, %p417
      %p419 = scmp.ne.s32.totalorder %s407, %s408
      %p420 = scmp.eq.s32.totalorder %s43, 3
      %p421 = por %p419, %p420
      %p423 = scmp.ne.s32.totalorder %s408, %s422
      %p424 = scmp.eq.s32.totalorder %s43, 0
      %p425 = por %p423, %p424
      %s427 = sadd.s32 %s426, 1
      %p430 = scmp.eq.s32.totalorder %s37, 3
      %p431 = scmp.ne.s32.totalorder %s426, %s428
      %p432 = scmp.eq.s32.totalorder %s37, 0
      %p433 = por %p431, %p432
      %p434 = scmp.ne.s32.totalorder %s426, %s428
      %p435 = scmp.eq.s32.totalorder %s42, 3
      %p436 = por %p434, %p435
      %p437 = scmp.ne.s32.totalorder %s428, %s429
      %p438 = scmp.eq.s32.totalorder %s42, 0
      %p439 = por %p437, %p438
      %p440 = scmp.ne.s32.totalorder %s428, %s429
      %p441 = scmp.eq.s32.totalorder %s43, 3
      %p442 = por %p440, %p441
      %p444 = scmp.ne.s32.totalorder %s429, %s443
      %p445 = scmp.eq.s32.totalorder %s43, 0
      %p446 = por %p444, %p445
      %s448 = sadd.s32 %s447, 1
      %p451 = scmp.eq.s32.totalorder %s37, 3
      %p452 = scmp.ne.s32.totalorder %s447, %s449
      %p453 = scmp.eq.s32.totalorder %s37, 0
      %p454 = por %p452, %p453
      %p455 = scmp.ne.s32.totalorder %s447, %s449
      %p456 = scmp.eq.s32.totalorder %s42, 3
      %p457 = por %p455, %p456
      %p458 = scmp.ne.s32.totalorder %s449, %s450
      %p459 = scmp.eq.s32.totalorder %s42, 0
      %p460 = por %p458, %p459
      %p461 = scmp.ne.s32.totalorder %s449, %s450
      %p462 = scmp.eq.s32.totalorder %s43, 3
      %p463 = por %p461, %p462
      %p465 = scmp.ne.s32.totalorder %s450, %s464
      %p466 = scmp.eq.s32.totalorder %s43, 0
      %p467 = por %p465, %p466
      %s469 = sadd.s32 %s468, 1
      %p472 = scmp.eq.s32.totalorder %s37, 3
      %p473 = scmp.ne.s32.totalorder %s468, %s470
      %p474 = scmp.eq.s32.totalorder %s37, 0
      %p475 = por %p473, %p474
      %p476 = scmp.ne.s32.totalorder %s468, %s470
      %p477 = scmp.eq.s32.totalorder %s42, 3
      %p478 = por %p476, %p477
      %p479 = scmp.ne.s32.totalorder %s470, %s471
      %p480 = scmp.eq.s32.totalorder %s42, 0
      %p481 = por %p479, %p480
      %p482 = scmp.ne.s32.totalorder %s470, %s471
      %p483 = scmp.eq.s32.totalorder %s43, 3
      %p484 = por %p482, %p483
      %p486 = scmp.ne.s32.totalorder %s471, %s485
      %p487 = scmp.eq.s32.totalorder %s43, 0
      %p488 = por %p486, %p487
      %s490 = sadd.s32 %s489, 1
      %p493 = scmp.eq.s32.totalorder %s37, 3
      %p494 = scmp.ne.s32.totalorder %s489, %s491
      %p495 = scmp.eq.s32.totalorder %s37, 0
      %p496 = por %p494, %p495
      %p497 = scmp.ne.s32.totalorder %s489, %s491
      %p498 = scmp.eq.s32.totalorder %s42, 3
      %p499 = por %p497, %p498
      %p500 = scmp.ne.s32.totalorder %s491, %s492
      %p501 = scmp.eq.s32.totalorder %s42, 0
      %p502 = por %p500, %p501
      %p503 = scmp.ne.s32.totalorder %s491, %s492
      %p504 = scmp.eq.s32.totalorder %s43, 3
      %p505 = por %p503, %p504
      %p507 = scmp.ne.s32.totalorder %s492, %s506
      %p508 = scmp.eq.s32.totalorder %s43, 0
      %p509 = por %p507, %p508
      %s511 = sadd.s32 %s510, 1
      %p514 = scmp.eq.s32.totalorder %s37, 3
      %p515 = scmp.ne.s32.totalorder %s510, %s512
      %p516 = scmp.eq.s32.totalorder %s37, 0
      %p517 = por %p515, %p516
      %p518 = scmp.ne.s32.totalorder %s510, %s512
      %p519 = scmp.eq.s32.totalorder %s42, 3
      %p520 = por %p518, %p519
      %p521 = scmp.ne.s32.totalorder %s512, %s513
      %p522 = scmp.eq.s32.totalorder %s42, 0
      %p523 = por %p521, %p522
      %p524 = scmp.ne.s32.totalorder %s512, %s513
      %p525 = scmp.eq.s32.totalorder %s43, 3
      %p526 = por %p524, %p525
      %p528 = scmp.ne.s32.totalorder %s513, %s527
      %p529 = scmp.eq.s32.totalorder %s43, 0
      %p530 = por %p528, %p529
      %s531 = ssub.s32 %s44, %s56
      %p532 = scmp.eq.s32.totalorder %s531, 0
      %s534 = sadd.s32 %s533, 1
      %s535 = scalar_select %p532, %s533, %s534
      %p538 = pneg %p532
      %p539 = scmp.eq.s32.totalorder %s37, 3
      %p540 = por %p538, %p539
      %p541 = scmp.ne.s32.totalorder %s533, %s536
      %p542 = scmp.eq.s32.totalorder %s37, 0
      %p543 = por %p541, %p542
      %p544 = scmp.ne.s32.totalorder %s533, %s536
      %p545 = scmp.eq.s32.totalorder %s42, 3
      %p546 = por %p544, %p545
      %p547 = scmp.ne.s32.totalorder %s536, %s537
      %p548 = scmp.eq.s32.totalorder %s42, 0
      %p549 = por %p547, %p548
      %p550 = scmp.ne.s32.totalorder %s536, %s537
      %p551 = scmp.eq.s32.totalorder %s43, 3
      %p552 = por %p550, %p551
      %p554 = scmp.ne.s32.totalorder %s537, %s553
      %p555 = scmp.eq.s32.totalorder %s43, 0
      %p556 = por %p554, %p555
      %p557 = scmp.le.s32.totalorder 1, %s37
      %p558 = scmp.lt.s32.totalorder %s37, 5
      %p559 = pnand %p557, %p558
      %p560 = pneg %p559
      // Predicated region
      $region9: #{tpu_custom_call.1} parent=5 // pred_check
        _
      $region10: #{tpu_custom_call.1} parent=5 // pred_check_branch
        %562 = sbr.rel (%p559) target = $region12
      $region11: #{tpu_custom_call.1} parent=5 // pred_region
        %s563 = ssub.s32 %s37, 1
        // Predicated region
        $region13: #{tpu_custom_call.1} parent=11 // pred_check
          %p564 = pneg %p124
        $region14: #{tpu_custom_call.1} parent=11 // pred_check_branch
          %566 = sbr.rel (%p564) target = $region16
        $region15: #{tpu_custom_call.1} parent=11 // pred_region
          %568 = vsyncadd [#allocation7], 0
          %s569 = sshll.u32 %s2, 4
          %s570 = int_to_ptr.hbm [resolvable:$true] %s569
          %s571 = sshll.u32 [#allocation6], 4
          %s572 = int_to_ptr.vmem [resolvable:$true] %s571
          %577 = dma.hbm_to_vmem [thread:$0]  %s570, 2048, %s572, [#allocation7], 128, 128, 8
        $region16: #{tpu_custom_call.1} parent=11 // pred_fallthru
          _
        // Predicated region
        $region17: #{tpu_custom_call.1} parent=11 // pred_check
          %p578 = pneg %p145
        $region18: #{tpu_custom_call.1} parent=11 // pred_check_branch
          %580 = sbr.rel (%p578) target = $region20
        $region19: #{tpu_custom_call.1} parent=11 // pred_region
          _
        $region20: #{tpu_custom_call.1} parent=11 // pred_fallthru
          _
        // Predicated region
        $region21: #{tpu_custom_call.1} parent=11 // pred_check
          %p581 = pneg %p166
        $region22: #{tpu_custom_call.1} parent=11 // pred_check_branch
          %583 = sbr.rel (%p581) target = $region24
        $region23: #{tpu_custom_call.1} parent=11 // pred_region
          _
        $region24: #{tpu_custom_call.1} parent=11 // pred_fallthru
          _
        // Predicated region
        $region25: #{tpu_custom_call.1} parent=11 // pred_check
          %p584 = pneg %p187
        $region26: #{tpu_custom_call.1} parent=11 // pred_check_branch
          %586 = sbr.rel (%p584) target = $region28
        $region27: #{tpu_custom_call.1} parent=11 // pred_region
          _
        $region28: #{tpu_custom_call.1} parent=11 // pred_fallthru
          _
        // Predicated region
        $region29: #{tpu_custom_call.1} parent=11 // pred_check
          %p587 = pneg %p208
        $region30: #{tpu_custom_call.1} parent=11 // pred_check_branch
          %589 = sbr.rel (%p587) target = $region32
        $region31: #{tpu_custom_call.1} parent=11 // pred_region
          %591 = vsyncadd [#allocation7], 0
          %s592 = sshll.u32 %s6, 4
          %s593 = int_to_ptr.hbm [resolvable:$true] %s592
          %s594 = sshll.u32 [#allocation8], 4
          %s595 = int_to_ptr.vmem [resolvable:$true] %s594
          %600 = dma.hbm_to_vmem [thread:$0]  %s593, 2048, %s595, [#allocation7], 128, 128, 8
        $region32: #{tpu_custom_call.1} parent=11 // pred_fallthru
          _
        // Predicated region
        $region33: #{tpu_custom_call.1} parent=11 // pred_check
          %p601 = pneg %p229
        $region34: #{tpu_custom_call.1} parent=11 // pred_check_branch
          %603 = sbr.rel (%p601) target = $region36
        $region35: #{tpu_custom_call.1} parent=11 // pred_region
          _
        $region36: #{tpu_custom_call.1} parent=11 // pred_fallthru
          _
        // Predicated region
        $region37: #{tpu_custom_call.1} parent=11 // pred_check
          %p604 = pneg %p250
        $region38: #{tpu_custom_call.1} parent=11 // pred_check_branch
          %606 = sbr.rel (%p604) target = $region40
        $region39: #{tpu_custom_call.1} parent=11 // pred_region
          _
        $region40: #{tpu_custom_call.1} parent=11 // pred_fallthru
          _
        // Predicated region
        $region41: #{tpu_custom_call.1} parent=11 // pred_check
          %p607 = pneg %p271
        $region42: #{tpu_custom_call.1} parent=11 // pred_check_branch
          %609 = sbr.rel (%p607) target = $region44
        $region43: #{tpu_custom_call.1} parent=11 // pred_region
          _
        $region44: #{tpu_custom_call.1} parent=11 // pred_fallthru
          _
        // Predicated region
        $region45: #{tpu_custom_call.1} parent=11 // pred_check
          %p610 = pneg %p292
        $region46: #{tpu_custom_call.1} parent=11 // pred_check_branch
          %612 = sbr.rel (%p610) target = $region48
        $region47: #{tpu_custom_call.1} parent=11 // pred_region
          %614 = vsyncadd [#allocation10], 0
          %s615 = sshll.u32 %s10, 4
          %s616 = int_to_ptr.hbm [resolvable:$true] %s615
          %s617 = sshll.u32 [#allocation9], 4
          %s618 = int_to_ptr.vmem [resolvable:$true] %s617
          %623 = dma.hbm_to_vmem [thread:$0]  %s616, 2048, %s618, [#allocation10], 128, 128, 8
        $region48: #{tpu_custom_call.1} parent=11 // pred_fallthru
          _
        // Predicated region
        $region49: #{tpu_custom_call.1} parent=11 // pred_check
          %p624 = pneg %p313
        $region50: #{tpu_custom_call.1} parent=11 // pred_check_branch
          %626 = sbr.rel (%p624) target = $region52
        $region51: #{tpu_custom_call.1} parent=11 // pred_region
          _
        $region52: #{tpu_custom_call.1} parent=11 // pred_fallthru
          _
        // Predicated region
        $region53: #{tpu_custom_call.1} parent=11 // pred_check
          %p627 = pneg %p334
        $region54: #{tpu_custom_call.1} parent=11 // pred_check_branch
          %629 = sbr.rel (%p627) target = $region56
        $region55: #{tpu_custom_call.1} parent=11 // pred_region
          _
        $region56: #{tpu_custom_call.1} parent=11 // pred_fallthru
          _
        // Predicated region
        $region57: #{tpu_custom_call.1} parent=11 // pred_check
          %p630 = pneg %p355
        $region58: #{tpu_custom_call.1} parent=11 // pred_check_branch
          %632 = sbr.rel (%p630) target = $region60
        $region59: #{tpu_custom_call.1} parent=11 // pred_region
          _
        $region60: #{tpu_custom_call.1} parent=11 // pred_fallthru
          _
        // Predicated region
        $region61: #{tpu_custom_call.1} parent=11 // pred_check
          %p633 = pneg %p376
        $region62: #{tpu_custom_call.1} parent=11 // pred_check_branch
          %635 = sbr.rel (%p633) target = $region64
        $region63: #{tpu_custom_call.1} parent=11 // pred_region
          %637 = vsyncadd [#allocation10], 0
          %s638 = sshll.u32 %s14, 4
          %s639 = int_to_ptr.hbm [resolvable:$true] %s638
          %s640 = sshll.u32 [#allocation11], 4
          %s641 = int_to_ptr.vmem [resolvable:$true] %s640
          %646 = dma.hbm_to_vmem [thread:$0]  %s639, 2048, %s641, [#allocation10], 128, 128, 8
        $region64: #{tpu_custom_call.1} parent=11 // pred_fallthru
          _
        // Predicated region
        $region65: #{tpu_custom_call.1} parent=11 // pred_check
          %p647 = pneg %p397
        $region66: #{tpu_custom_call.1} parent=11 // pred_check_branch
          %649 = sbr.rel (%p647) target = $region68
        $region67: #{tpu_custom_call.1} parent=11 // pred_region
          _
        $region68: #{tpu_custom_call.1} parent=11 // pred_fallthru
          _
        // Predicated region
        $region69: #{tpu_custom_call.1} parent=11 // pred_check
          %p650 = pneg %p418
        $region70: #{tpu_custom_call.1} parent=11 // pred_check_branch
          %652 = sbr.rel (%p650) target = $region72
        $region71: #{tpu_custom_call.1} parent=11 // pred_region
          _
        $region72: #{tpu_custom_call.1} parent=11 // pred_fallthru
          _
        // Predicated region
        $region73: #{tpu_custom_call.1} parent=11 // pred_check
          %p653 = pneg %p439
        $region74: #{tpu_custom_call.1} parent=11 // pred_check_branch
          %655 = sbr.rel (%p653) target = $region76
        $region75: #{tpu_custom_call.1} parent=11 // pred_region
          _
        $region76: #{tpu_custom_call.1} parent=11 // pred_fallthru
          _
        // Predicated region
        $region77: #{tpu_custom_call.1} parent=11 // pred_check
          %p656 = pneg %p460
        $region78: #{tpu_custom_call.1} parent=11 // pred_check_branch
          %658 = sbr.rel (%p656) target = $region80
        $region79: #{tpu_custom_call.1} parent=11 // pred_region
          %660 = vsyncadd [#allocation13], 0
          %s661 = sshll.u32 %s18, 4
          %s662 = int_to_ptr.hbm [resolvable:$true] %s661
          %s663 = sshll.u32 [#allocation12], 4
          %s664 = int_to_ptr.vmem [resolvable:$true] %s663
          %669 = dma.hbm_to_vmem [thread:$0]  %s662, 2048, %s664, [#allocation13], 128, 128, 8
        $region80: #{tpu_custom_call.1} parent=11 // pred_fallthru
          _
        // Predicated region
        $region81: #{tpu_custom_call.1} parent=11 // pred_check
          %p670 = pneg %p481
        $region82: #{tpu_custom_call.1} parent=11 // pred_check_branch
          %672 = sbr.rel (%p670) target = $region84
        $region83: #{tpu_custom_call.1} parent=11 // pred_region
          _
        $region84: #{tpu_custom_call.1} parent=11 // pred_fallthru
          _
        // Predicated region
        $region85: #{tpu_custom_call.1} parent=11 // pred_check
          %p673 = pneg %p502
        $region86: #{tpu_custom_call.1} parent=11 // pred_check_branch
          %675 = sbr.rel (%p673) target = $region88
        $region87: #{tpu_custom_call.1} parent=11 // pred_region
          _
        $region88: #{tpu_custom_call.1} parent=11 // pred_fallthru
          _
        // Predicated region
        $region89: #{tpu_custom_call.1} parent=11 // pred_check
          %p676 = pneg %p523
        $region90: #{tpu_custom_call.1} parent=11 // pred_check_branch
          %678 = sbr.rel (%p676) target = $region92
        $region91: #{tpu_custom_call.1} parent=11 // pred_region
          _
        $region92: #{tpu_custom_call.1} parent=11 // pred_fallthru
          _
      $region12: #{tpu_custom_call.1} parent=5 // pred_fallthru
        _
      %p679 = scmp.lt.s32.totalorder %s37, 4
      // Predicated region
      $region93: #{tpu_custom_call.1} parent=5 // pred_check
        %p680 = pneg %p679
      $region94: #{tpu_custom_call.1} parent=5 // pred_check_branch
        %682 = sbr.rel (%p680) target = $region96
      $region95: #{tpu_custom_call.1} parent=5 // pred_region
        // Predicated region
        $region97: #{tpu_custom_call.1} parent=95 // pred_check
          %p683 = pneg %p71
        $region98: #{tpu_custom_call.1} parent=95 // pred_check_branch
          %685 = sbr.rel (%p683) target = $region100
        $region99: #{tpu_custom_call.1} parent=95 // pred_region
          %s686 = sand.u32 %s61, 1
          %s687 = scalar_lea.sflag [#allocation4], %s686
          %s688 = sand.u32 %s61, 1
          %s689 = smul.addr %s688, 8
          %s690 = scalar_lea.vmem [#allocation3], %s689
          %692 = vsyncadd %s687, 0
          %s693 = smul.addr %s44, 2
          %s694 = sadd.s32 %s45, %s693
          %s695 = smul.addr %s694, 8
          %s696 = scalar_lea.hbm %s0, %s695
          %s698 = sshll.u32 %s696, 4
          %s699 = int_to_ptr.hbm [resolvable:$true] %s698
          %s700 = sshll.u32 %s690, 4
          %s701 = int_to_ptr.vmem [resolvable:$true] %s700
          %703 = dma.hbm_to_vmem [thread:$0]  %s699, 128, %s701, %s687
        $region100: #{tpu_custom_call.1} parent=95 // pred_fallthru
          _
        // Predicated region
        $region101: #{tpu_custom_call.1} parent=95 // pred_check
          %p704 = pneg %p97
        $region102: #{tpu_custom_call.1} parent=95 // pred_check_branch
          %706 = sbr.rel (%p704) target = $region104
        $region103: #{tpu_custom_call.1} parent=95 // pred_region
          %p707 = scmp.lt.s32.totalorder %s45, 1
          %s708 = scalar_select %p707, %s45, 1
          %s709 = smul.addr %s708, 8
          %s710 = scalar_lea.vmem %s1, %s709
        $region104: #{tpu_custom_call.1} parent=95 // pred_fallthru
          _
      $region96: #{tpu_custom_call.1} parent=5 // pred_fallthru
        _
      %p711 = scmp.le.s32.totalorder 1, %s37
      %p712 = scmp.lt.s32.totalorder %s37, 5
      %p713 = pnand %p711, %p712
      %p714 = pneg %p713
      // Predicated region
      $region105: #{tpu_custom_call.1} parent=5 // pred_check
        _
      $region106: #{tpu_custom_call.1} parent=5 // pred_check_branch
        %716 = sbr.rel (%p713) target = $region108
      $region107: #{tpu_custom_call.1} parent=5 // pred_region
        %s717 = ssub.s32 %s37, 1
        %s718 = sand.u32 %s64, 1
        %s719 = scalar_lea.sflag [#allocation4], %s718
        %s720 = sand.u32 %s64, 1
        %s721 = smul.addr %s720, 8
        %s722 = scalar_lea.vmem [#allocation3], %s721
        // Predicated region
        $region109: #{tpu_custom_call.1} parent=107 // pred_check
          %p723 = pneg %p77
        $region110: #{tpu_custom_call.1} parent=107 // pred_check_branch
          %725 = sbr.rel (%p723) target = $region112
        $region111: #{tpu_custom_call.1} parent=107 // pred_region
          %727 = dma.done %s719, 128
        $region112: #{tpu_custom_call.1} parent=107 // pred_fallthru
          _
        // Predicated region
        $region113: #{tpu_custom_call.1} parent=107 // pred_check
          %p728 = pneg %p124
        $region114: #{tpu_custom_call.1} parent=107 // pred_check_branch
          %730 = sbr.rel (%p728) target = $region116
        $region115: #{tpu_custom_call.1} parent=107 // pred_region
          %732 = dma.done [#allocation7], 2048
        $region116: #{tpu_custom_call.1} parent=107 // pred_fallthru
          _
        // Predicated region
        $region117: #{tpu_custom_call.1} parent=107 // pred_check
          %p733 = pneg %p208
        $region118: #{tpu_custom_call.1} parent=107 // pred_check_branch
          %735 = sbr.rel (%p733) target = $region120
        $region119: #{tpu_custom_call.1} parent=107 // pred_region
          %737 = dma.done [#allocation7], 2048
        $region120: #{tpu_custom_call.1} parent=107 // pred_fallthru
          _
        // Predicated region
        $region121: #{tpu_custom_call.1} parent=107 // pred_check
          %p738 = pneg %p292
        $region122: #{tpu_custom_call.1} parent=107 // pred_check_branch
          %740 = sbr.rel (%p738) target = $region124
        $region123: #{tpu_custom_call.1} parent=107 // pred_region
          %742 = dma.done [#allocation10], 2048
        $region124: #{tpu_custom_call.1} parent=107 // pred_fallthru
          _
        // Predicated region
        $region125: #{tpu_custom_call.1} parent=107 // pred_check
          %p743 = pneg %p376
        $region126: #{tpu_custom_call.1} parent=107 // pred_check_branch
          %745 = sbr.rel (%p743) target = $region128
        $region127: #{tpu_custom_call.1} parent=107 // pred_region
          %747 = dma.done [#allocation10], 2048
        $region128: #{tpu_custom_call.1} parent=107 // pred_fallthru
          _
        // Predicated region
        $region129: #{tpu_custom_call.1} parent=107 // pred_check
          %p748 = pneg %p460
        $region130: #{tpu_custom_call.1} parent=107 // pred_check_branch
          %750 = sbr.rel (%p748) target = $region132
        $region131: #{tpu_custom_call.1} parent=107 // pred_region
          %752 = dma.done [#allocation13], 2048
        $region132: #{tpu_custom_call.1} parent=107 // pred_fallthru
          _
        %s753 = sand.u32 %s64, 1
        %s754 = scalar_lea.sflag [#allocation4], %s753
        %s755 = sand.u32 %s64, 1
        %s756 = smul.addr %s755, 8
        %s757 = scalar_lea.vmem [#allocation3], %s756
        %p758 = pneg %p77
        %p759 = pneg %p74
        %p760 = scmp.lt.s32.totalorder %s47, 1
        %s761 = scalar_select %p760, %s47, 1
        %s762 = smul.addr %s761, 8
        %s763 = scalar_lea.vmem %s1, %s762
        %p764 = pneg %p103
        %p765 = pneg %p100
        %p766 = pneg %p124
        %p767 = pneg %p121
        %p768 = pneg %p145
        %p769 = pneg %p142
        %p770 = pneg %p166
        %p771 = pneg %p163
        %p772 = pneg %p187
        %p773 = pneg %p184
        %p774 = pneg %p208
        %p775 = pneg %p205
        %p776 = pneg %p229
        %p777 = pneg %p226
        %p778 = pneg %p250
        %p779 = pneg %p247
        %p780 = pneg %p271
        %p781 = pneg %p268
        %p782 = pneg %p292
        %p783 = pneg %p289
        %p784 = pneg %p313
        %p785 = pneg %p310
        %p786 = pneg %p334
        %p787 = pneg %p331
        %p788 = pneg %p355
        %p789 = pneg %p352
        %p790 = pneg %p376
        %p791 = pneg %p373
        %p792 = pneg %p397
        %p793 = pneg %p394
        %p794 = pneg %p418
        %p795 = pneg %p415
        %p796 = pneg %p439
        %p797 = pneg %p436
        %p798 = pneg %p460
        %p799 = pneg %p457
        %p800 = pneg %p481
        %p801 = pneg %p478
        %p802 = pneg %p502
        %p803 = pneg %p499
        %p804 = pneg %p523
        %p805 = pneg %p520
        %p806 = pneg %p549
        %p807 = pneg %p546
        %s808 = sand.u32 %s536, 1
        %s809 = scalar_lea.sflag [#allocation5], %s808
        %s810 = sand.u32 %s536, 1
        %s811 = smul.addr %s810, 8
        %s812 = scalar_lea.vmem [#allocation14], %s811
        %p813 = scmp.lt.s32.totalorder %s47, 1
        %s814 = scalar_select %p813, %s47, 1
        %s815 = smul.addr %s814, 8
        %s816 = scalar_lea.vmem %s1, %s815
        %p817 = scmp.eq.s32.totalorder %s47, 0
        // Predicated region
        $region133: #{tpu_custom_call.1} parent=107 // pred_check
          %p818 = pneg %p817
        $region134: #{tpu_custom_call.1} parent=107 // pred_check_branch
          %820 = sbr.rel (%p818) target = $region136
        $region135: #{tpu_custom_call.1} parent=107 // pred_region
          %821 = vst [vmem:[#allocation2] sm:$0xff] 0.0
        $region136: #{tpu_custom_call.1} parent=107 // pred_fallthru
          _
        %v822 = vld [vmem:[%s722] sm:$0xff]
        %v823 = vld [vmem:[#allocation6] sm:$0xff]
        %v824 = vld [vmem:[#allocation6 + $0x8] sm:$0xff]
        %v825 = vld [vmem:[#allocation6 + $0x10] sm:$0xff]
        %v826 = vld [vmem:[#allocation6 + $0x18] sm:$0xff]
        %v827 = vld [vmem:[#allocation6 + $0x20] sm:$0xff]
        %v828 = vld [vmem:[#allocation6 + $0x28] sm:$0xff]
        %v829 = vld [vmem:[#allocation6 + $0x30] sm:$0xff]
        %v830 = vld [vmem:[#allocation6 + $0x38] sm:$0xff]
        %v831 = vld [vmem:[#allocation6 + $0x40] sm:$0xff]
        %v832 = vld [vmem:[#allocation6 + $0x48] sm:$0xff]
        %v833 = vld [vmem:[#allocation6 + $0x50] sm:$0xff]
        %v834 = vld [vmem:[#allocation6 + $0x58] sm:$0xff]
        %v835 = vld [vmem:[#allocation6 + $0x60] sm:$0xff]
        %v836 = vld [vmem:[#allocation6 + $0x68] sm:$0xff]
        %v837 = vld [vmem:[#allocation6 + $0x70] sm:$0xff]
        %v838 = vld [vmem:[#allocation6 + $0x78] sm:$0xff]
        %v839 = vld [vmem:[%s3] sm:$0x1]
        %v841 = vperm.slane %v839, 0
        %843 = vmatpush.msra.mxu0 %v838
        %844 = vmatpush.msra.mxu0 %v837
        %845 = vmatpush.msra.mxu0 %v836
        %846 = vmatpush.msra.mxu0 %v835
        %847 = vmatpush.msra.mxu0 %v834
        %848 = vmatpush.msra.mxu0 %v833
        %849 = vmatpush.msra.mxu0 %v832
        %850 = vmatpush.msra.mxu0 %v831
        %851 = vmatpush.msra.mxu0 %v830
        %852 = vmatpush.msra.mxu0 %v829
        %853 = vmatpush.msra.mxu0 %v828
        %854 = vmatpush.msra.mxu0 %v827
        %855 = vmatpush.msra.mxu0 %v826
        %856 = vmatpush.msra.mxu0 %v825
        %857 = vmatpush.msra.mxu0 %v824
        %858 = vmatpush.msra.mxu0 %v823
        %859 = vmatmul.f32.gmra.mxu0 %v822
        %v860 = vpop.f32.mrf.mxu0
        %v861 = vadd.f32 %v841, %v860
        %862 = vdwg.mxu0
        %v863 = vld [vmem:[%s4] sm:$0x1]
        %v864 = vld [vmem:[%s5] sm:$0x1]
        %865 = vadd.xlane.f32.xlu0 %v861
        %v866 = vpop.xlane.xlu0 %865
        %v867 = vmul.f32 %v861, %v861
        %868 = vadd.xlane.f32.xlu0 %v867
        %v869 = vpop.xlane.xlu0 %868
        %v870 = vmul.f32 %v866, 0.015625
        %v871 = vmul.f32 %v869, 0.015625
        %v872 = vmul.f32 %v870, %v870
        %v873 = vsub.f32 %v871, %v872
        %v874 = vmax.f32 %v873, 0.0
        %v875 = vsub.f32 %v861, %v870
        %v876 = vadd.f32 %v874, 1e-05
        %v877 = vrsqrt.pop %v876
        %v878 = vmul.f32 %v877, %v876
        %v879 = vmul.f32 %v878, %v877
        %v880 = vmul.f32 0.5, %v879
        %v881 = vsub.f32 1.5, %v880
        %v882 = vmul.f32 %v877, %v881
        %vm883 = vweird.f32 %v876
        %vm884 = vweird.f32 %v877
        %vm885 = vmor %vm883, %vm884
        %v886 = vsel %vm885, %v877, %v882
        %v887 = vmul.f32 %v875, %v886
        %v889 = vperm.slane %v863, 0
        %v891 = vmul.f32 %v887, %v889
        %v893 = vperm.slane %v864, 0
        %v895 = vadd.f32 %v891, %v893
        %v896 = vmul.f32 %v895, 0.5
        %v897 = vmul.f32 %v895, 0.70710677
        %vm898 = vcmp.ge.f32.partialorder %v897, 0.0
        %v899 = vsel %vm898, 1.0, -1.0
        %v900 = vand.u32 2147483647, %v897
        %v901 = vmul.f32 %v900, 0.3275911
        %v902 = vadd.f32 %v901, 1.0
        %v903 = vrcp.pop %v902
        %v904 = vmul.f32 %v902, %v903
        %v905 = vsub.f32 1.0, %v904
        %v906 = vmul.f32 %v903, %v905
        %v907 = vadd.f32 %v903, %v906
        %vm908 = vweird.f32 %v902
        %vm909 = vweird.f32 %v903
        %vm910 = vmor %vm908, %vm909
        %v911 = vsel %vm910, %v903, %v907
        %v912 = vand.u32 2147483647, %v902
        %vm913 = vcmp.eq.f32.partialorder %v912, 8.507059e+37
        %v914 = vand.u32 %v902, 2147483648
        %v915 = vor.u32 1.1754944e-38, %v914
        %v916 = vsel %vm913, %v915, %v911
        %v917 = vmul.f32 1.0, %v916
        %v918 = vmul.f32 %v917, 1.0614054
        %v919 = vadd.f32 %v918, -1.4531521
        %v920 = vmul.f32 %v919, %v917
        %v921 = vadd.f32 %v920, 1.4214138
        %v922 = vmul.f32 %v921, %v917
        %v923 = vadd.f32 %v922, -0.28449672
        %v924 = vmul.f32 %v923, %v917
        %v925 = vadd.f32 %v924, 0.2548296
        %v926 = vmul.f32 %v925, %v917
        %v927 = vsub.f32 0.0, %v900
        %v928 = vmul.f32 %v927, %v900
        %v929 = vmul.f32 %v928, 1.442695
        %v930 = vpow.pop %v929
        %v931 = vmul.f32 %v926, %v930
        %v932 = vsub.f32 1.0, %v931
        %v933 = vmul.f32 %v899, %v932
        %v934 = vadd.f32 %v933, 1.0
        %v935 = vmul.f32 %v896, %v934
        %v936 = vld [vmem:[#allocation8] sm:$0xff]
        %v937 = vld [vmem:[#allocation8 + $0x8] sm:$0xff]
        %v938 = vld [vmem:[#allocation8 + $0x10] sm:$0xff]
        %v939 = vld [vmem:[#allocation8 + $0x18] sm:$0xff]
        %v940 = vld [vmem:[#allocation8 + $0x20] sm:$0xff]
        %v941 = vld [vmem:[#allocation8 + $0x28] sm:$0xff]
        %v942 = vld [vmem:[#allocation8 + $0x30] sm:$0xff]
        %v943 = vld [vmem:[#allocation8 + $0x38] sm:$0xff]
        %v944 = vld [vmem:[#allocation8 + $0x40] sm:$0xff]
        %v945 = vld [vmem:[#allocation8 + $0x48] sm:$0xff]
        %v946 = vld [vmem:[#allocation8 + $0x50] sm:$0xff]
        %v947 = vld [vmem:[#allocation8 + $0x58] sm:$0xff]
        %v948 = vld [vmem:[#allocation8 + $0x60] sm:$0xff]
        %v949 = vld [vmem:[#allocation8 + $0x68] sm:$0xff]
        %v950 = vld [vmem:[#allocation8 + $0x70] sm:$0xff]
        %v951 = vld [vmem:[#allocation8 + $0x78] sm:$0xff]
        %v952 = vld [vmem:[%s7] sm:$0x1]
        %v954 = vperm.slane %v952, 0
        %956 = vmatpush.msra.mxu0 %v951
        %957 = vmatpush.msra.mxu0 %v950
        %958 = vmatpush.msra.mxu0 %v949
        %959 = vmatpush.msra.mxu0 %v948
        %960 = vmatpush.msra.mxu0 %v947
        %961 = vmatpush.msra.mxu0 %v946
        %962 = vmatpush.msra.mxu0 %v945
        %963 = vmatpush.msra.mxu0 %v944
        %964 = vmatpush.msra.mxu0 %v943
        %965 = vmatpush.msra.mxu0 %v942
        %966 = vmatpush.msra.mxu0 %v941
        %967 = vmatpush.msra.mxu0 %v940
        %968 = vmatpush.msra.mxu0 %v939
        %969 = vmatpush.msra.mxu0 %v938
        %970 = vmatpush.msra.mxu0 %v937
        %971 = vmatpush.msra.mxu0 %v936
        %972 = vmatmul.f32.gmra.mxu0 %v935
        %v973 = vpop.f32.mrf.mxu0
        %v974 = vadd.f32 %v954, %v973
        %975 = vdwg.mxu0
        %v976 = vld [vmem:[%s8] sm:$0x1]
        %v977 = vld [vmem:[%s9] sm:$0x1]
        %978 = vadd.xlane.f32.xlu0 %v974
        %v979 = vpop.xlane.xlu0 %978
        %v980 = vmul.f32 %v974, %v974
        %981 = vadd.xlane.f32.xlu0 %v980
        %v982 = vpop.xlane.xlu0 %981
        %v983 = vmul.f32 %v979, 0.015625
        %v984 = vmul.f32 %v982, 0.015625
        %v985 = vmul.f32 %v983, %v983
        %v986 = vsub.f32 %v984, %v985
        %v987 = vmax.f32 %v986, 0.0
        %v988 = vsub.f32 %v974, %v983
        %v989 = vadd.f32 %v987, 1e-05
        %v990 = vrsqrt.pop %v989
        %v991 = vmul.f32 %v990, %v989
        %v992 = vmul.f32 %v991, %v990
        %v993 = vmul.f32 0.5, %v992
        %v994 = vsub.f32 1.5, %v993
        %v995 = vmul.f32 %v990, %v994
        %vm996 = vweird.f32 %v989
        %vm997 = vweird.f32 %v990
        %vm998 = vmor %vm996, %vm997
        %v999 = vsel %vm998, %v990, %v995
        %v1000 = vmul.f32 %v988, %v999
        %v1002 = vperm.slane %v976, 0
        %v1004 = vmul.f32 %v1000, %v1002
        %v1006 = vperm.slane %v977, 0
        %v1008 = vadd.f32 %v1004, %v1006
        %v1009 = vmul.f32 %v1008, 0.5
        %v1010 = vmul.f32 %v1008, 0.70710677
        %vm1011 = vcmp.ge.f32.partialorder %v1010, 0.0
        %v1012 = vsel %vm1011, 1.0, -1.0
        %v1013 = vand.u32 2147483647, %v1010
        %v1014 = vmul.f32 %v1013, 0.3275911
        %v1015 = vadd.f32 %v1014, 1.0
        %v1016 = vrcp.pop %v1015
        %v1017 = vmul.f32 %v1015, %v1016
        %v1018 = vsub.f32 1.0, %v1017
        %v1019 = vmul.f32 %v1016, %v1018
        %v1020 = vadd.f32 %v1016, %v1019
        %vm1021 = vweird.f32 %v1015
        %vm1022 = vweird.f32 %v1016
        %vm1023 = vmor %vm1021, %vm1022
        %v1024 = vsel %vm1023, %v1016, %v1020
        %v1025 = vand.u32 2147483647, %v1015
        %vm1026 = vcmp.eq.f32.partialorder %v1025, 8.507059e+37
        %v1027 = vand.u32 %v1015, 2147483648
        %v1028 = vor.u32 1.1754944e-38, %v1027
        %v1029 = vsel %vm1026, %v1028, %v1024
        %v1030 = vmul.f32 1.0, %v1029
        %v1031 = vmul.f32 %v1030, 1.0614054
        %v1032 = vadd.f32 %v1031, -1.4531521
        %v1033 = vmul.f32 %v1032, %v1030
        %v1034 = vadd.f32 %v1033, 1.4214138
        %v1035 = vmul.f32 %v1034, %v1030
        %v1036 = vadd.f32 %v1035, -0.28449672
        %v1037 = vmul.f32 %v1036, %v1030
        %v1038 = vadd.f32 %v1037, 0.2548296
        %v1039 = vmul.f32 %v1038, %v1030
        %v1040 = vsub.f32 0.0, %v1013
        %v1041 = vmul.f32 %v1040, %v1013
        %v1042 = vmul.f32 %v1041, 1.442695
        %v1043 = vpow.pop %v1042
        %v1044 = vmul.f32 %v1039, %v1043
        %v1045 = vsub.f32 1.0, %v1044
        %v1046 = vmul.f32 %v1012, %v1045
        %v1047 = vadd.f32 %v1046, 1.0
        %v1048 = vmul.f32 %v1009, %v1047
        %v1049 = vld [vmem:[#allocation9] sm:$0xff]
        %v1050 = vld [vmem:[#allocation9 + $0x8] sm:$0xff]
        %v1051 = vld [vmem:[#allocation9 + $0x10] sm:$0xff]
        %v1052 = vld [vmem:[#allocation9 + $0x18] sm:$0xff]
        %v1053 = vld [vmem:[#allocation9 + $0x20] sm:$0xff]
        %v1054 = vld [vmem:[#allocation9 + $0x28] sm:$0xff]
        %v1055 = vld [vmem:[#allocation9 + $0x30] sm:$0xff]
        %v1056 = vld [vmem:[#allocation9 + $0x38] sm:$0xff]
        %v1057 = vld [vmem:[#allocation9 + $0x40] sm:$0xff]
        %v1058 = vld [vmem:[#allocation9 + $0x48] sm:$0xff]
        %v1059 = vld [vmem:[#allocation9 + $0x50] sm:$0xff]
        %v1060 = vld [vmem:[#allocation9 + $0x58] sm:$0xff]
        %v1061 = vld [vmem:[#allocation9 + $0x60] sm:$0xff]
        %v1062 = vld [vmem:[#allocation9 + $0x68] sm:$0xff]
        %v1063 = vld [vmem:[#allocation9 + $0x70] sm:$0xff]
        %v1064 = vld [vmem:[#allocation9 + $0x78] sm:$0xff]
        %v1065 = vld [vmem:[%s11] sm:$0x1]
        %v1067 = vperm.slane %v1065, 0
        %1069 = vmatpush.msra.mxu0 %v1064
        %1070 = vmatpush.msra.mxu0 %v1063
        %1071 = vmatpush.msra.mxu0 %v1062
        %1072 = vmatpush.msra.mxu0 %v1061
        %1073 = vmatpush.msra.mxu0 %v1060
        %1074 = vmatpush.msra.mxu0 %v1059
        %1075 = vmatpush.msra.mxu0 %v1058
        %1076 = vmatpush.msra.mxu0 %v1057
        %1077 = vmatpush.msra.mxu0 %v1056
        %1078 = vmatpush.msra.mxu0 %v1055
        %1079 = vmatpush.msra.mxu0 %v1054
        %1080 = vmatpush.msra.mxu0 %v1053
        %1081 = vmatpush.msra.mxu0 %v1052
        %1082 = vmatpush.msra.mxu0 %v1051
        %1083 = vmatpush.msra.mxu0 %v1050
        %1084 = vmatpush.msra.mxu0 %v1049
        %1085 = vmatmul.f32.gmra.mxu0 %v1048
        %v1086 = vpop.f32.mrf.mxu0
        %v1087 = vadd.f32 %v1067, %v1086
        %1088 = vdwg.mxu0
        %v1089 = vld [vmem:[%s12] sm:$0x1]
        %v1090 = vld [vmem:[%s13] sm:$0x1]
        %1091 = vadd.xlane.f32.xlu0 %v1087
        %v1092 = vpop.xlane.xlu0 %1091
        %v1093 = vmul.f32 %v1087, %v1087
        %1094 = vadd.xlane.f32.xlu0 %v1093
        %v1095 = vpop.xlane.xlu0 %1094
        %v1096 = vmul.f32 %v1092, 0.015625
        %v1097 = vmul.f32 %v1095, 0.015625
        %v1098 = vmul.f32 %v1096, %v1096
        %v1099 = vsub.f32 %v1097, %v1098
        %v1100 = vmax.f32 %v1099, 0.0
        %v1101 = vsub.f32 %v1087, %v1096
        %v1102 = vadd.f32 %v1100, 1e-05
        %v1103 = vrsqrt.pop %v1102
        %v1104 = vmul.f32 %v1103, %v1102
        %v1105 = vmul.f32 %v1104, %v1103
        %v1106 = vmul.f32 0.5, %v1105
        %v1107 = vsub.f32 1.5, %v1106
        %v1108 = vmul.f32 %v1103, %v1107
        %vm1109 = vweird.f32 %v1102
        %vm1110 = vweird.f32 %v1103
        %vm1111 = vmor %vm1109, %vm1110
        %v1112 = vsel %vm1111, %v1103, %v1108
        %v1113 = vmul.f32 %v1101, %v1112
        %v1115 = vperm.slane %v1089, 0
        %v1117 = vmul.f32 %v1113, %v1115
        %v1119 = vperm.slane %v1090, 0
        %v1121 = vadd.f32 %v1117, %v1119
        %v1122 = vmul.f32 %v1121, 0.5
        %v1123 = vmul.f32 %v1121, 0.70710677
        %vm1124 = vcmp.ge.f32.partialorder %v1123, 0.0
        %v1125 = vsel %vm1124, 1.0, -1.0
        %v1126 = vand.u32 2147483647, %v1123
        %v1127 = vmul.f32 %v1126, 0.3275911
        %v1128 = vadd.f32 %v1127, 1.0
        %v1129 = vrcp.pop %v1128
        %v1130 = vmul.f32 %v1128, %v1129
        %v1131 = vsub.f32 1.0, %v1130
        %v1132 = vmul.f32 %v1129, %v1131
        %v1133 = vadd.f32 %v1129, %v1132
        %vm1134 = vweird.f32 %v1128
        %vm1135 = vweird.f32 %v1129
        %vm1136 = vmor %vm1134, %vm1135
        %v1137 = vsel %vm1136, %v1129, %v1133
        %v1138 = vand.u32 2147483647, %v1128
        %vm1139 = vcmp.eq.f32.partialorder %v1138, 8.507059e+37
        %v1140 = vand.u32 %v1128, 2147483648
        %v1141 = vor.u32 1.1754944e-38, %v1140
        %v1142 = vsel %vm1139, %v1141, %v1137
        %v1143 = vmul.f32 1.0, %v1142
        %v1144 = vmul.f32 %v1143, 1.0614054
        %v1145 = vadd.f32 %v1144, -1.4531521
        %v1146 = vmul.f32 %v1145, %v1143
        %v1147 = vadd.f32 %v1146, 1.4214138
        %v1148 = vmul.f32 %v1147, %v1143
        %v1149 = vadd.f32 %v1148, -0.28449672
        %v1150 = vmul.f32 %v1149, %v1143
        %v1151 = vadd.f32 %v1150, 0.2548296
        %v1152 = vmul.f32 %v1151, %v1143
        %v1153 = vsub.f32 0.0, %v1126
        %v1154 = vmul.f32 %v1153, %v1126
        %v1155 = vmul.f32 %v1154, 1.442695
        %v1156 = vpow.pop %v1155
        %v1157 = vmul.f32 %v1152, %v1156
        %v1158 = vsub.f32 1.0, %v1157
        %v1159 = vmul.f32 %v1125, %v1158
        %v1160 = vadd.f32 %v1159, 1.0
        %v1161 = vmul.f32 %v1122, %v1160
        %v1162 = vld [vmem:[%s816] sm:$0xff]
        %1163 = vxpose.xlu0.b32.start [1/16] %v1162, 128
        %1164 = vxpose.xlu0.b32.cont [2/16] 0.0, 128
        %1165 = vxpose.xlu0.b32.cont [3/16] 0.0, 128
        %1166 = vxpose.xlu0.b32.cont [4/16] 0.0, 128
        %1167 = vxpose.xlu0.b32.cont [5/16] 0.0, 128
        %1168 = vxpose.xlu0.b32.cont [6/16] 0.0, 128
        %1169 = vxpose.xlu0.b32.cont [7/16] 0.0, 128
        %1170 = vxpose.xlu0.b32.cont [8/16] 0.0, 128
        %1171 = vxpose.xlu0.b32.cont [9/16] 0.0, 128
        %1172 = vxpose.xlu0.b32.cont [10/16] 0.0, 128
        %1173 = vxpose.xlu0.b32.cont [11/16] 0.0, 128
        %1174 = vxpose.xlu0.b32.cont [12/16] 0.0, 128
        %1175 = vxpose.xlu0.b32.cont [13/16] 0.0, 128
        %1176 = vxpose.xlu0.b32.cont [14/16] 0.0, 128
        %1177 = vxpose.xlu0.b32.cont [15/16] 0.0, 128
        %1178 = vxpose.xlu0.b32.end [16/16] 0.0, 128
        %v1179 = vpop.trf.xlu0
        %v1180 = vpop.trf.xlu0
        %v1181 = vpop.trf.xlu0
        %v1182 = vpop.trf.xlu0
        %v1183 = vpop.trf.xlu0
        %v1184 = vpop.trf.xlu0
        %v1185 = vpop.trf.xlu0
        %v1186 = vpop.trf.xlu0
        %v1187 = vpop.trf.xlu0
        %v1188 = vpop.trf.xlu0
        %v1189 = vpop.trf.xlu0
        %v1190 = vpop.trf.xlu0
        %v1191 = vpop.trf.xlu0
        %v1192 = vpop.trf.xlu0
        %v1193 = vpop.trf.xlu0
        %v1194 = vpop.trf.xlu0
        %vm1195 = vcmask 64512
        %v1197 = vsel %vm1195, %v1179, 0
        %1199 = vmatpush.msra.mxu0 0.0
        %1200 = vmatpush.msra.mxu0 0.0
        %1201 = vmatpush.msra.mxu0 0.0
        %1202 = vmatpush.msra.mxu0 0.0
        %1203 = vmatpush.msra.mxu0 0.0
        %1204 = vmatpush.msra.mxu0 0.0
        %1205 = vmatpush.msra.mxu0 0.0
        %1206 = vmatpush.msra.mxu0 0.0
        %1207 = vmatpush.msra.mxu0 0.0
        %1208 = vmatpush.msra.mxu0 0.0
        %1209 = vmatpush.msra.mxu0 0.0
        %1210 = vmatpush.msra.mxu0 0.0
        %1211 = vmatpush.msra.mxu0 0.0
        %1212 = vmatpush.msra.mxu0 0.0
        %1213 = vmatpush.msra.mxu0 0.0
        %1214 = vmatpush.msra.mxu0 %v1161
        %1215 = vmatmul.f32.gmra.mxu0 %v1197
        %v1216 = vpop.f32.mrf.mxu0
        %v1217 = vadd.f32 0.0, %v1216
        %1218 = vdwg.mxu0
        %v1219 = vld [vmem:[#allocation2] sm:$0xff]
        %v1220 = vadd.f32 %v1219, %v1217
        %1221 = vst [vmem:[#allocation2] sm:$0xff] %v1220
        %p1222 = scmp.eq.s32.totalorder %s47, 1
        // Predicated region
        $region137: #{tpu_custom_call.1} parent=107 // pred_check
          %p1223 = pneg %p1222
        $region138: #{tpu_custom_call.1} parent=107 // pred_check_branch
          %1225 = sbr.rel (%p1223) target = $region140
        $region139: #{tpu_custom_call.1} parent=107 // pred_region
          %v1226 = vld [vmem:[#allocation2] sm:$0xff]
          %v1227 = vld [vmem:[#allocation11] sm:$0xff]
          %v1228 = vld [vmem:[#allocation11 + $0x8] sm:$0xff]
          %v1229 = vld [vmem:[#allocation11 + $0x10] sm:$0xff]
          %v1230 = vld [vmem:[#allocation11 + $0x18] sm:$0xff]
          %v1231 = vld [vmem:[#allocation11 + $0x20] sm:$0xff]
          %v1232 = vld [vmem:[#allocation11 + $0x28] sm:$0xff]
          %v1233 = vld [vmem:[#allocation11 + $0x30] sm:$0xff]
          %v1234 = vld [vmem:[#allocation11 + $0x38] sm:$0xff]
          %v1235 = vld [vmem:[#allocation11 + $0x40] sm:$0xff]
          %v1236 = vld [vmem:[#allocation11 + $0x48] sm:$0xff]
          %v1237 = vld [vmem:[#allocation11 + $0x50] sm:$0xff]
          %v1238 = vld [vmem:[#allocation11 + $0x58] sm:$0xff]
          %v1239 = vld [vmem:[#allocation11 + $0x60] sm:$0xff]
          %v1240 = vld [vmem:[#allocation11 + $0x68] sm:$0xff]
          %v1241 = vld [vmem:[#allocation11 + $0x70] sm:$0xff]
          %v1242 = vld [vmem:[#allocation11 + $0x78] sm:$0xff]
          %v1243 = vld [vmem:[%s15] sm:$0x1]
          %v1245 = vperm.slane %v1243, 0
          %1247 = vmatpush.msra.mxu0 %v1242
          %1248 = vmatpush.msra.mxu0 %v1241
          %1249 = vmatpush.msra.mxu0 %v1240
          %1250 = vmatpush.msra.mxu0 %v1239
          %1251 = vmatpush.msra.mxu0 %v1238
          %1252 = vmatpush.msra.mxu0 %v1237
          %1253 = vmatpush.msra.mxu0 %v1236
          %1254 = vmatpush.msra.mxu0 %v1235
          %1255 = vmatpush.msra.mxu0 %v1234
          %1256 = vmatpush.msra.mxu0 %v1233
          %1257 = vmatpush.msra.mxu0 %v1232
          %1258 = vmatpush.msra.mxu0 %v1231
          %1259 = vmatpush.msra.mxu0 %v1230
          %1260 = vmatpush.msra.mxu0 %v1229
          %1261 = vmatpush.msra.mxu0 %v1228
          %1262 = vmatpush.msra.mxu0 %v1227
          %1263 = vmatmul.f32.gmra.mxu0 %v1226
          %v1264 = vpop.f32.mrf.mxu0
          %v1265 = vadd.f32 %v1245, %v1264
          %1266 = vdwg.mxu0
          %v1267 = vld [vmem:[%s16] sm:$0x1]
          %v1268 = vld [vmem:[%s17] sm:$0x1]
          %1269 = vadd.xlane.f32.xlu0 %v1265
          %v1270 = vpop.xlane.xlu0 %1269
          %v1271 = vmul.f32 %v1265, %v1265
          %1272 = vadd.xlane.f32.xlu0 %v1271
          %v1273 = vpop.xlane.xlu0 %1272
          %v1274 = vmul.f32 %v1270, 0.03125
          %v1275 = vmul.f32 %v1273, 0.03125
          %v1276 = vmul.f32 %v1274, %v1274
          %v1277 = vsub.f32 %v1275, %v1276
          %v1278 = vmax.f32 %v1277, 0.0
          %v1279 = vsub.f32 %v1265, %v1274
          %v1280 = vadd.f32 %v1278, 1e-05
          %v1281 = vrsqrt.pop %v1280
          %v1282 = vmul.f32 %v1281, %v1280
          %v1283 = vmul.f32 %v1282, %v1281
          %v1284 = vmul.f32 0.5, %v1283
          %v1285 = vsub.f32 1.5, %v1284
          %v1286 = vmul.f32 %v1281, %v1285
          %vm1287 = vweird.f32 %v1280
          %vm1288 = vweird.f32 %v1281
          %vm1289 = vmor %vm1287, %vm1288
          %v1290 = vsel %vm1289, %v1281, %v1286
          %v1291 = vmul.f32 %v1279, %v1290
          %v1293 = vperm.slane %v1267, 0
          %v1295 = vmul.f32 %v1291, %v1293
          %v1297 = vperm.slane %v1268, 0
          %v1299 = vadd.f32 %v1295, %v1297
          %v1300 = vmul.f32 %v1299, 0.5
          %v1301 = vmul.f32 %v1299, 0.70710677
          %vm1302 = vcmp.ge.f32.partialorder %v1301, 0.0
          %v1303 = vsel %vm1302, 1.0, -1.0
          %v1304 = vand.u32 2147483647, %v1301
          %v1305 = vmul.f32 %v1304, 0.3275911
          %v1306 = vadd.f32 %v1305, 1.0
          %v1307 = vrcp.pop %v1306
          %v1308 = vmul.f32 %v1306, %v1307
          %v1309 = vsub.f32 1.0, %v1308
          %v1310 = vmul.f32 %v1307, %v1309
          %v1311 = vadd.f32 %v1307, %v1310
          %vm1312 = vweird.f32 %v1306
          %vm1313 = vweird.f32 %v1307
          %vm1314 = vmor %vm1312, %vm1313
          %v1315 = vsel %vm1314, %v1307, %v1311
          %v1316 = vand.u32 2147483647, %v1306
          %vm1317 = vcmp.eq.f32.partialorder %v1316, 8.507059e+37
          %v1318 = vand.u32 %v1306, 2147483648
          %v1319 = vor.u32 1.1754944e-38, %v1318
          %v1320 = vsel %vm1317, %v1319, %v1315
          %v1321 = vmul.f32 1.0, %v1320
          %v1322 = vmul.f32 %v1321, 1.0614054
          %v1323 = vadd.f32 %v1322, -1.4531521
          %v1324 = vmul.f32 %v1323, %v1321
          %v1325 = vadd.f32 %v1324, 1.4214138
          %v1326 = vmul.f32 %v1325, %v1321
          %v1327 = vadd.f32 %v1326, -0.28449672
          %v1328 = vmul.f32 %v1327, %v1321
          %v1329 = vadd.f32 %v1328, 0.2548296
          %v1330 = vmul.f32 %v1329, %v1321
          %v1331 = vsub.f32 0.0, %v1304
          %v1332 = vmul.f32 %v1331, %v1304
          %v1333 = vmul.f32 %v1332, 1.442695
          %v1334 = vpow.pop %v1333
          %v1335 = vmul.f32 %v1330, %v1334
          %v1336 = vsub.f32 1.0, %v1335
          %v1337 = vmul.f32 %v1303, %v1336
          %v1338 = vadd.f32 %v1337, 1.0
          %v1339 = vmul.f32 %v1300, %v1338
          %v1340 = vld [vmem:[#allocation12] sm:$0xff]
          %v1341 = vld [vmem:[#allocation12 + $0x8] sm:$0xff]
          %v1342 = vld [vmem:[#allocation12 + $0x10] sm:$0xff]
          %v1343 = vld [vmem:[#allocation12 + $0x18] sm:$0xff]
          %v1344 = vld [vmem:[#allocation12 + $0x20] sm:$0xff]
          %v1345 = vld [vmem:[#allocation12 + $0x28] sm:$0xff]
          %v1346 = vld [vmem:[#allocation12 + $0x30] sm:$0xff]
          %v1347 = vld [vmem:[#allocation12 + $0x38] sm:$0xff]
          %v1348 = vld [vmem:[#allocation12 + $0x40] sm:$0xff]
          %v1349 = vld [vmem:[#allocation12 + $0x48] sm:$0xff]
          %v1350 = vld [vmem:[#allocation12 + $0x50] sm:$0xff]
          %v1351 = vld [vmem:[#allocation12 + $0x58] sm:$0xff]
          %v1352 = vld [vmem:[#allocation12 + $0x60] sm:$0xff]
          %v1353 = vld [vmem:[#allocation12 + $0x68] sm:$0xff]
          %v1354 = vld [vmem:[#allocation12 + $0x70] sm:$0xff]
          %v1355 = vld [vmem:[#allocation12 + $0x78] sm:$0xff]
          %v1356 = vld [vmem:[%s19] sm:$0x1]
          %v1358 = vperm.slane %v1356, 0
          %1360 = vmatpush.msra.mxu0 %v1355
          %1361 = vmatpush.msra.mxu0 %v1354
          %1362 = vmatpush.msra.mxu0 %v1353
          %1363 = vmatpush.msra.mxu0 %v1352
          %1364 = vmatpush.msra.mxu0 %v1351
          %1365 = vmatpush.msra.mxu0 %v1350
          %1366 = vmatpush.msra.mxu0 %v1349
          %1367 = vmatpush.msra.mxu0 %v1348
          %1368 = vmatpush.msra.mxu0 %v1347
          %1369 = vmatpush.msra.mxu0 %v1346
          %1370 = vmatpush.msra.mxu0 %v1345
          %1371 = vmatpush.msra.mxu0 %v1344
          %1372 = vmatpush.msra.mxu0 %v1343
          %1373 = vmatpush.msra.mxu0 %v1342
          %1374 = vmatpush.msra.mxu0 %v1341
          %1375 = vmatpush.msra.mxu0 %v1340
          %1376 = vmatmul.f32.gmra.mxu0 %v1339
          %v1377 = vpop.f32.mrf.mxu0
          %v1378 = vadd.f32 %v1358, %v1377
          %1379 = vdwg.mxu0
          %v1380 = vld [vmem:[%s20] sm:$0x1]
          %v1381 = vld [vmem:[%s21] sm:$0x1]
          %1382 = vadd.xlane.f32.xlu0 %v1378
          %v1383 = vpop.xlane.xlu0 %1382
          %v1384 = vmul.f32 %v1378, %v1378
          %1385 = vadd.xlane.f32.xlu0 %v1384
          %v1386 = vpop.xlane.xlu0 %1385
          %v1387 = vmul.f32 %v1383, 0.020833334
          %v1388 = vmul.f32 %v1386, 0.020833334
          %v1389 = vmul.f32 %v1387, %v1387
          %v1390 = vsub.f32 %v1388, %v1389
          %v1391 = vmax.f32 %v1390, 0.0
          %v1392 = vsub.f32 %v1378, %v1387
          %v1393 = vadd.f32 %v1391, 1e-05
          %v1394 = vrsqrt.pop %v1393
          %v1395 = vmul.f32 %v1394, %v1393
          %v1396 = vmul.f32 %v1395, %v1394
          %v1397 = vmul.f32 0.5, %v1396
          %v1398 = vsub.f32 1.5, %v1397
          %v1399 = vmul.f32 %v1394, %v1398
          %vm1400 = vweird.f32 %v1393
          %vm1401 = vweird.f32 %v1394
          %vm1402 = vmor %vm1400, %vm1401
          %v1403 = vsel %vm1402, %v1394, %v1399
          %v1404 = vmul.f32 %v1392, %v1403
          %v1406 = vperm.slane %v1380, 0
          %v1408 = vmul.f32 %v1404, %v1406
          %v1410 = vperm.slane %v1381, 0
          %v1412 = vadd.f32 %v1408, %v1410
          %1413 = vst [vmem:[%s812] sm:$0xff] %v1412
        $region140: #{tpu_custom_call.1} parent=107 // pred_fallthru
          _
        %s1414 = sand.u32 %s536, 1
        %s1415 = scalar_lea.sflag [#allocation5], %s1414
        %s1416 = sand.u32 %s536, 1
        %s1417 = smul.addr %s1416, 8
        %s1418 = scalar_lea.vmem [#allocation14], %s1417
        // Predicated region
        $region141: #{tpu_custom_call.1} parent=107 // pred_check
          %p1419 = pneg %p546
        $region142: #{tpu_custom_call.1} parent=107 // pred_check_branch
          %1421 = sbr.rel (%p1419) target = $region144
        $region143: #{tpu_custom_call.1} parent=107 // pred_region
          %1423 = vsyncadd %s1415, 0
          %s1424 = smul.addr %s46, 8
          %s1425 = scalar_lea.hbm %s22, %s1424
          %s1427 = sshll.u32 %s1418, 4
          %s1428 = int_to_ptr.vmem [resolvable:$true] %s1427
          %s1429 = sshll.u32 %s1425, 4
          %s1430 = int_to_ptr.hbm [resolvable:$true] %s1429
          %1432 = dma.vmem_to_hbm [thread:$0]  %s1428, 128, %s1430, %s1415
        $region144: #{tpu_custom_call.1} parent=107 // pred_fallthru
          _
      $region108: #{tpu_custom_call.1} parent=5 // pred_fallthru
        _
      %p1433 = scmp.le.s32.totalorder 2, %s37
      // Predicated region
      $region145: #{tpu_custom_call.1} parent=5 // pred_check
        %p1434 = pneg %p1433
      $region146: #{tpu_custom_call.1} parent=5 // pred_check_branch
        %1436 = sbr.rel (%p1434) target = $region148
      $region147: #{tpu_custom_call.1} parent=5 // pred_region
        %s1437 = ssub.s32 %s37, 2
        // Predicated region
        $region149: #{tpu_custom_call.1} parent=147 // pred_check
          %p1438 = pneg %p552
        $region150: #{tpu_custom_call.1} parent=147 // pred_check_branch
          %1440 = sbr.rel (%p1438) target = $region152
        $region151: #{tpu_custom_call.1} parent=147 // pred_region
          %s1441 = sand.u32 %s537, 1
          %s1442 = scalar_lea.sflag [#allocation5], %s1441
          %s1443 = sand.u32 %s537, 1
          %s1444 = smul.addr %s1443, 8
          %s1445 = scalar_lea.vmem [#allocation14], %s1444
          %1447 = dma.done %s1442, 128
        $region152: #{tpu_custom_call.1} parent=147 // pred_fallthru
          _
      $region148: #{tpu_custom_call.1} parent=5 // pred_fallthru
        _
    $region6: #{tpu_custom_call.1} parent=1 // loop_footer
      %s41 = sadd.s32 1, %s37
    $region7: #{tpu_custom_call.1} parent=1 // loop_footer_branch
      %36 = sbr.rel target = $region3
    $region8: #{tpu_custom_call.1} parent=1 // loop_exit
      _
    %1448 = vsyncpa [#allocation4], 1
    %s1449 = scalar_lea.sflag [#allocation4], 1
    %1450 = vsyncpa %s1449, 1
    %1451 = vsyncpa [#allocation7], 1
    %1452 = vsyncpa [#allocation10], 1
    %1453 = vsyncpa [#allocation13], 1
    %1454 = vsyncpa [#allocation5], 1
    %s1455 = scalar_lea.sflag [#allocation5], 1
    %1456 = vsyncpa %s1455, 1

</llo_original>
